<compile_context>
chip_gen: v5e
topology: v5e:2x2
jax: 0.10.0
libtpu: 0.0.40
codegen_flags: <defaults>
</compile_context>

<pallas_src>
import functools

import jax
import jax.numpy as jnp
from jax import lax
from jax.experimental import pallas as pl
from jax.experimental.pallas import tpu as pltpu

LANE = 128

# Whole-table-in-VMEM path is gated on padded table size.  4 MiB is
# comfortably inside the scoped-VMEM default on every generation (v7x: 64 MiB
# physical / 32 MiB scoped default; v5e/v6e: 128 MiB physical).
_TABLE_VMEM_BYTES_LIMIT = 4 * 1024 * 1024


def _round_up(x, m):
    return ((x + m - 1) // m) * m


def _lstm_compute(x, w_ih_ref, w_hh_ref, b_ref, w_tag_ref, b_tag_ref, out_ref,
                  *, hidden_pad, seq_len, is_nll_loss):
    """Shared compute: x is the gathered (S, Ep) embedding block (a value)."""
    Hp = hidden_pad
    S = seq_len

    # 1) Batched input projection: one (S,Ep)@(Ep,4Hp) MXU matmul + bias,
    #    off the serial critical path.
    xproj = (jnp.dot(x, w_ih_ref[...], preferred_element_type=jnp.float32)
             + b_ref[...])                                    # (S, 4Hp)

    # 2) Serial recurrence, statically unrolled.  Gate slices are
    #    lane-aligned (each gate occupies Hp=128 lanes); per-gate zero padding
    #    keeps padded h/c lanes exactly zero for all steps.
    h = jnp.zeros((1, Hp), jnp.float32)
    c = jnp.zeros((1, Hp), jnp.float32)
    hs = []
    for t in range(S):
        # NOTE: w_hh_ref is deliberately re-read inside the loop.  The
        # (Hp, 4Hp) f32 tile is 256 KiB = 64 vregs; keeping it live as a
        # hoisted value across the unrolled steps would spill/remat on the
        # critical path.  (See TODO(synk) above re: matmul_push_rhs.)
        gates = (jnp.dot(h, w_hh_ref[...],
                         preferred_element_type=jnp.float32)
                 + xproj[t:t + 1, :])                         # (1, 4Hp)
        i_g = jax.nn.sigmoid(gates[:, 0 * Hp:1 * Hp])
        f_g = jax.nn.sigmoid(gates[:, 1 * Hp:2 * Hp])
        g_g = jnp.tanh(gates[:, 2 * Hp:3 * Hp])
        o_g = jax.nn.sigmoid(gates[:, 3 * Hp:4 * Hp])
        c = f_g * c + i_g * g_g
        h = o_g * jnp.tanh(c)
        hs.append(h)                                          # stays in regs

    # 3) Hidden rows never touch VMEM scratch: one dense (S,Hp) value feeds
    #    the tag matmul directly; single lane-dense (S, Op) store at the end.
    hs_all = jnp.concatenate(hs, axis=0)                      # (S, Hp)
    logits = (jnp.dot(hs_all, w_tag_ref[...],
                      preferred_element_type=jnp.float32) + b_tag_ref[...])
    if is_nll_loss:
        # Padded tag lanes carry a -1e30 bias -> exp underflows to 0, so the
        # normalization only sees the real O classes.
        m = jnp.max(logits, axis=-1, keepdims=True)
        lse = m + jnp.log(jnp.sum(jnp.exp(logits - m), axis=-1,
                                  keepdims=True))
        logits = logits - lse
    out_ref[...] = logits


def _kernel_table_in_vmem(sent_ref, emb_ref, w_ih_ref, w_hh_ref, b_ref,
                          w_tag_ref, b_tag_ref, out_ref, *,
                          hidden_pad, seq_len, is_nll_loss):
    """Small-vocab path: whole padded table lands in VMEM via ONE DMA
    (BlockSpec), rows gathered with dynamic leading-dim loads."""
    S = seq_len
    rows = [emb_ref[sent_ref[t]] for t in range(S)]           # each (1, Ep)
    x = jnp.concatenate(rows, axis=0)                         # (S, Ep)
    _lstm_compute(x, w_ih_ref, w_hh_ref, b_ref, w_tag_ref, b_tag_ref, out_ref,
                  hidden_pad=hidden_pad, seq_len=seq_len,
                  is_nll_loss=is_nll_loss)


def _kernel_table_in_hbm(sent_ref, emb_hbm_ref, w_ih_ref, w_hh_ref, b_ref,
                         w_tag_ref, b_tag_ref, out_ref, x_vmem, dma_sem, *,
                         hidden_pad, seq_len, is_nll_loss):
    """Large-vocab path: table stays in HBM; only the S referenced rows are
    row-gathered, all DMAs sharing ONE semaphore (issue all, then drain)."""
    S = seq_len
    copies = []
    for t in range(S):
        cp = pltpu.make_async_copy(emb_hbm_ref.at[pl.ds(sent_ref[t], 1), :],
                                   x_vmem.at[pl.ds(t, 1), :],
                                   dma_sem)
        cp.start()
        copies.append(cp)
    for cp in copies:          # single shared sem: waits coalesce into one drain
        cp.wait()
    _lstm_compute(x_vmem[...], w_ih_ref, w_hh_ref, b_ref, w_tag_ref, b_tag_ref,
                  out_ref, hidden_pad=hidden_pad, seq_len=seq_len,
                  is_nll_loss=is_nll_loss)


def lstm_tagger_forward(sentence, params, *, is_nll_loss=False):
    emb = params["embedding"]                     # (V, E)
    w_ih = params["w_ih"]                         # (4H, E), gate order i,f,g,o
    w_hh = params["w_hh"]                         # (4H, H)
    b_sum = params["b_ih"] + params["b_hh"]       # (4H,)
    w_tag = params["w_tag"]                       # (O, H)
    b_tag = params["b_tag"]                       # (O,)

    S = int(sentence.shape[0])
    V, E = emb.shape
    H = w_hh.shape[1]
    O = w_tag.shape[0]

    Ep = _round_up(E, LANE)
    Hp = _round_up(H, LANE)
    Op = _round_up(O, LANE)

    f32 = jnp.float32
    # Zero-pad embedding columns so a gathered row is a full lane-dense (1,Ep)
    # block and x @ w_ih needs no masking.  Weights stay f32: bf16 would halve
    # weight DMA bytes but threatens the 1e-4 tolerance at these tiny shapes.
    emb_p = jnp.zeros((V, Ep), f32).at[:, :E].set(emb.astype(f32))

    # Pre-transpose + per-gate pad LSTM weights so gate k lives in lanes
    # [k*Hp, k*Hp+H) and padded lanes stay exactly zero through the recurrence.
    w_ih_t_p = jnp.zeros((Ep, 4 * Hp), f32)
    w_hh_t_p = jnp.zeros((Hp, 4 * Hp), f32)
    b_p = jnp.zeros((1, 4 * Hp), f32)
    for g in range(4):
        w_ih_t_p = w_ih_t_p.at[:E, g * Hp:g * Hp + H].set(
            w_ih[g * H:(g + 1) * H, :].T)
        w_hh_t_p = w_hh_t_p.at[:H, g * Hp:g * Hp + H].set(
            w_hh[g * H:(g + 1) * H, :].T)
        b_p = b_p.at[0, g * Hp:g * Hp + H].set(b_sum[g * H:(g + 1) * H])

    w_tag_t_p = jnp.zeros((Hp, Op), f32).at[:H, :O].set(w_tag.T)
    # -1e30 in padded tag lanes => they vanish under log_softmax; sliced off
    # afterwards either way.
    b_tag_p = jnp.full((1, Op), -1e30, f32).at[0, :O].set(b_tag)

    # Clamp token ids (review correctness concern: ids become row offsets).
    sent_ids = jnp.clip(sentence.astype(jnp.int32), 0, V - 1)

    weight_specs = [
        pl.BlockSpec((Ep, 4 * Hp), lambda i, sent: (0, 0)),   # w_ih^T
        pl.BlockSpec((Hp, 4 * Hp), lambda i, sent: (0, 0)),   # w_hh^T
        pl.BlockSpec((1, 4 * Hp), lambda i, sent: (0, 0)),    # bias
        pl.BlockSpec((Hp, Op), lambda i, sent: (0, 0)),       # w_tag^T
        pl.BlockSpec((1, Op), lambda i, sent: (0, 0)),        # b_tag
    ]

    table_bytes = V * Ep * 4
    if table_bytes <= _TABLE_VMEM_BYTES_LIMIT:
        # Small vocab: one DMA brings the whole table into VMEM.  Reshape to
        # (V, 1, Ep) so the in-kernel gather is a dynamic *leading-dim* load.
        emb_arg = emb_p.reshape(V, 1, Ep)
        kernel = functools.partial(_kernel_table_in_vmem, hidden_pad=Hp,
                                   seq_len=S, is_nll_loss=is_nll_loss)
        emb_spec = pl.BlockSpec((V, 1, Ep), lambda i, sent: (0, 0, 0))
        scratch_shapes = []
    else:
        # Large vocab: table stays in HBM; manual row-gather DMA, one shared
        # semaphore.
        emb_arg = emb_p
        kernel = functools.partial(_kernel_table_in_hbm, hidden_pad=Hp,
                                   seq_len=S, is_nll_loss=is_nll_loss)
        emb_spec = pl.BlockSpec(memory_space=pl.ANY)
        scratch_shapes = [pltpu.VMEM((S, Ep), f32),
                          pltpu.SemaphoreType.DMA(())]

    grid_spec = pltpu.PrefetchScalarGridSpec(
        num_scalar_prefetch=1,                    # sentence ids -> SMEM
        grid=(1,),
        in_specs=[emb_spec] + weight_specs,
        out_specs=pl.BlockSpec((S, Op), lambda i, sent: (0, 0)),
        scratch_shapes=scratch_shapes,
    )

    out = pl.pallas_call(
        kernel,
        grid_spec=grid_spec,
        out_shape=jax.ShapeDtypeStruct((S, Op), f32),
        compiler_params=pltpu.CompilerParams(
            dimension_semantics=("arbitrary",)),
    )(sent_ids, emb_arg, w_ih_t_p, w_hh_t_p, b_p, w_tag_t_p, b_tag_p)
    return out[:, :O]


def _reference_forward(sentence, params, *, is_nll_loss=False):
    """Pure-JAX reference matching PyTorch LSTM semantics."""
    emb = params["embedding"][sentence]           # (S, E)
    H = params["w_hh"].shape[1]
    b = params["b_ih"] + params["b_hh"]

    def step(carry, x_t):
        h, c = carry
        gates = x_t @ params["w_ih"].T + h @ params["w_hh"].T + b
        i_g = jax.nn.sigmoid(gates[0 * H:1 * H])
        f_g = jax.nn.sigmoid(gates[1 * H:2 * H])
        g_g = jnp.tanh(gates[2 * H:3 * H])
        o_g = jax.nn.sigmoid(gates[3 * H:4 * H])
        c_new = f_g * c + i_g * g_g
        h_new = o_g * jnp.tanh(c_new)
        return (h_new, c_new), h_new

    (_, _), hs = lax.scan(step, (jnp.zeros(H), jnp.zeros(H)), emb)
    logits = hs @ params["w_tag"].T + params["b_tag"]
    if is_nll_loss:
        logits = jax.nn.log_softmax(logits, axis=1)
    return logits


def init_params(key, vocab_size, embedding_dim, hidden_dim, output_size):
    ks = jax.random.split(key, 7)
    H = hidden_dim
    s = 1.0 / jnp.sqrt(jnp.float32(H))
    return {
        "embedding": jax.random.normal(ks[0], (vocab_size, embedding_dim),
                                       jnp.float32),
        "w_ih": jax.random.uniform(ks[1], (4 * H, embedding_dim), jnp.float32,
                                   -s, s),
        "w_hh": jax.random.uniform(ks[2], (4 * H, H), jnp.float32, -s, s),
        "b_ih": jax.random.uniform(ks[3], (4 * H,), jnp.float32, -s, s),
        "b_hh": jax.random.uniform(ks[4], (4 * H,), jnp.float32, -s, s),
        "w_tag": jax.random.uniform(ks[5], (output_size, H), jnp.float32,
                                    -s, s),
        "b_tag": jax.random.uniform(ks[6], (output_size,), jnp.float32,
                                    -s, s),
    }


if __name__ == "__main__":
    # Small shapes consistent with the module's docstring.
    embedding_dim = 6
    hidden_dim = 6
    vocab_size = 10
    output_size = 5
    seq_len = 8

    key = jax.random.PRNGKey(0)
    pkey, skey = jax.random.split(key)
    params = init_params(pkey, vocab_size, embedding_dim, hidden_dim,
                         output_size)
    sentence = jax.random.randint(skey, (seq_len,), 0, vocab_size,
                                  dtype=jnp.int32)

    for is_nll_loss in (False, True):
        out = lstm_tagger_forward(sentence, params, is_nll_loss=is_nll_loss)
        out = jax.block_until_ready(out)
        ref = _reference_forward(sentence, params, is_nll_loss=is_nll_loss)
        assert out.shape == (seq_len, output_size)
        assert jnp.allclose(out, ref, atol=1e-4), "mismatch vs JAX reference"

    print("KERNEL_OK")
</pallas_src>

<mosaic_0001>
module attributes {stable_mosaic.version = 11 : i64} {
  func.func @_kernel_table_in_vmem(%arg0: i32, %arg1: memref<8xi32, #tpu.memory_space<smem>>, %arg2: memref<10x1x128xf32, #tpu.memory_space<vmem>>, %arg3: memref<128x512xf32, #tpu.memory_space<vmem>>, %arg4: memref<128x512xf32, #tpu.memory_space<vmem>>, %arg5: memref<1x512xf32, #tpu.memory_space<vmem>>, %arg6: memref<128x128xf32, #tpu.memory_space<vmem>>, %arg7: memref<1x128xf32, #tpu.memory_space<vmem>>, %arg8: memref<8x128xf32, #tpu.memory_space<vmem>>) attributes {dimension_semantics = [#tpu.dimension_semantics<arbitrary>], iteration_bounds = array<i64: 1>, scalar_prefetch = 1 : i64, scratch_operands = 0 : i64, tpu.core_type = #tpu.core_type<tc>, window_params = [{pipeline_mode = #tpu.pipeline_mode<synchronous>, transform_indices = @transform_0, window_bounds = array<i64: 10, 1, 128>}, {pipeline_mode = #tpu.pipeline_mode<synchronous>, transform_indices = @transform_1, window_bounds = array<i64: 128, 512>}, {pipeline_mode = #tpu.pipeline_mode<synchronous>, transform_indices = @transform_2, window_bounds = array<i64: 128, 512>}, {pipeline_mode = #tpu.pipeline_mode<synchronous>, transform_indices = @transform_3, window_bounds = array<i64: 1, 512>}, {pipeline_mode = #tpu.pipeline_mode<synchronous>, transform_indices = @transform_4, window_bounds = array<i64: 128, 128>}, {pipeline_mode = #tpu.pipeline_mode<synchronous>, transform_indices = @transform_5, window_bounds = array<i64: 1, 128>}, {pipeline_mode = #tpu.pipeline_mode<synchronous>, transform_indices = @transform_6, window_bounds = array<i64: 8, 128>}]} {
    %c0 = arith.constant 0 : index
    %0 = memref.load %arg1[%c0] : memref<8xi32, #tpu.memory_space<smem>>
    %1 = arith.index_cast %0 : i32 to index
    %c0_0 = arith.constant 0 : index
    %c0_1 = arith.constant 0 : index
    %2 = vector.load %arg2[%1, %c0_0, %c0_1] : memref<10x1x128xf32, #tpu.memory_space<vmem>>, vector<1x1x128xf32>
    %3 = vector.shape_cast %2 : vector<1x1x128xf32> to vector<1x128xf32>
    %c1 = arith.constant 1 : index
    %4 = memref.load %arg1[%c1] : memref<8xi32, #tpu.memory_space<smem>>
    %5 = arith.index_cast %4 : i32 to index
    %c0_2 = arith.constant 0 : index
    %c0_3 = arith.constant 0 : index
    %6 = vector.load %arg2[%5, %c0_2, %c0_3] : memref<10x1x128xf32, #tpu.memory_space<vmem>>, vector<1x1x128xf32>
    %7 = vector.shape_cast %6 : vector<1x1x128xf32> to vector<1x128xf32>
    %c2 = arith.constant 2 : index
    %8 = memref.load %arg1[%c2] : memref<8xi32, #tpu.memory_space<smem>>
    %9 = arith.index_cast %8 : i32 to index
    %c0_4 = arith.constant 0 : index
    %c0_5 = arith.constant 0 : index
    %10 = vector.load %arg2[%9, %c0_4, %c0_5] : memref<10x1x128xf32, #tpu.memory_space<vmem>>, vector<1x1x128xf32>
    %11 = vector.shape_cast %10 : vector<1x1x128xf32> to vector<1x128xf32>
    %c3 = arith.constant 3 : index
    %12 = memref.load %arg1[%c3] : memref<8xi32, #tpu.memory_space<smem>>
    %13 = arith.index_cast %12 : i32 to index
    %c0_6 = arith.constant 0 : index
    %c0_7 = arith.constant 0 : index
    %14 = vector.load %arg2[%13, %c0_6, %c0_7] : memref<10x1x128xf32, #tpu.memory_space<vmem>>, vector<1x1x128xf32>
    %15 = vector.shape_cast %14 : vector<1x1x128xf32> to vector<1x128xf32>
    %c4 = arith.constant 4 : index
    %16 = memref.load %arg1[%c4] : memref<8xi32, #tpu.memory_space<smem>>
    %17 = arith.index_cast %16 : i32 to index
    %c0_8 = arith.constant 0 : index
    %c0_9 = arith.constant 0 : index
    %18 = vector.load %arg2[%17, %c0_8, %c0_9] : memref<10x1x128xf32, #tpu.memory_space<vmem>>, vector<1x1x128xf32>
    %19 = vector.shape_cast %18 : vector<1x1x128xf32> to vector<1x128xf32>
    %c5 = arith.constant 5 : index
    %20 = memref.load %arg1[%c5] : memref<8xi32, #tpu.memory_space<smem>>
    %21 = arith.index_cast %20 : i32 to index
    %c0_10 = arith.constant 0 : index
    %c0_11 = arith.constant 0 : index
    %22 = vector.load %arg2[%21, %c0_10, %c0_11] : memref<10x1x128xf32, #tpu.memory_space<vmem>>, vector<1x1x128xf32>
    %23 = vector.shape_cast %22 : vector<1x1x128xf32> to vector<1x128xf32>
    %c6 = arith.constant 6 : index
    %24 = memref.load %arg1[%c6] : memref<8xi32, #tpu.memory_space<smem>>
    %25 = arith.index_cast %24 : i32 to index
    %c0_12 = arith.constant 0 : index
    %c0_13 = arith.constant 0 : index
    %26 = vector.load %arg2[%25, %c0_12, %c0_13] : memref<10x1x128xf32, #tpu.memory_space<vmem>>, vector<1x1x128xf32>
    %27 = vector.shape_cast %26 : vector<1x1x128xf32> to vector<1x128xf32>
    %c7 = arith.constant 7 : index
    %28 = memref.load %arg1[%c7] : memref<8xi32, #tpu.memory_space<smem>>
    %29 = arith.index_cast %28 : i32 to index
    %c0_14 = arith.constant 0 : index
    %c0_15 = arith.constant 0 : index
    %30 = vector.load %arg2[%29, %c0_14, %c0_15] : memref<10x1x128xf32, #tpu.memory_space<vmem>>, vector<1x1x128xf32>
    %31 = vector.shape_cast %30 : vector<1x1x128xf32> to vector<1x128xf32>
    %32 = tpu.concatenate %3, %7, %11, %15, %19, %23, %27, %31 in 0 : vector<1x128xf32>, vector<1x128xf32>, vector<1x128xf32>, vector<1x128xf32>, vector<1x128xf32>, vector<1x128xf32>, vector<1x128xf32>, vector<1x128xf32> -> vector<8x128xf32>
    %c0_16 = arith.constant 0 : index
    %c0_17 = arith.constant 0 : index
    %33 = vector.load %arg3[%c0_16, %c0_17] : memref<128x512xf32, #tpu.memory_space<vmem>>, vector<128x512xf32>
    %cst = arith.constant dense<0.000000e+00> : vector<8x512xf32>
    %34 = tpu.matmul %32, %33, %cst {dimension_numbers = #tpu.dot_dimension_numbers<[1], [0], [0], [1], [0, 0, 1, 1], [], []>} : vector<8x128xf32>, vector<128x512xf32>, vector<8x512xf32> -> vector<8x512xf32>
    %c0_18 = arith.constant 0 : index
    %c0_19 = arith.constant 0 : index
    %35 = vector.load %arg5[%c0_18, %c0_19] : memref<1x512xf32, #tpu.memory_space<vmem>>, vector<1x512xf32>
    %36 = vector.broadcast %35 : vector<1x512xf32> to vector<8x512xf32>
    %37 = arith.addf %34, %36 : vector<8x512xf32>
    %cst_20 = arith.constant 0.000000e+00 : f32
    %38 = vector.broadcast %cst_20 : f32 to vector<1x128xf32>
    %cst_21 = arith.constant 0.000000e+00 : f32
    %39 = vector.broadcast %cst_21 : f32 to vector<1x128xf32>
    %c0_22 = arith.constant 0 : index
    %c0_23 = arith.constant 0 : index
    %40 = vector.load %arg4[%c0_22, %c0_23] : memref<128x512xf32, #tpu.memory_space<vmem>>, vector<128x512xf32>
    %cst_24 = arith.constant dense<0.000000e+00> : vector<1x512xf32>
    %41 = tpu.matmul %38, %40, %cst_24 {dimension_numbers = #tpu.dot_dimension_numbers<[1], [0], [0], [1], [0, 0, 1, 1], [], []>} : vector<1x128xf32>, vector<128x512xf32>, vector<1x512xf32> -> vector<1x512xf32>
    %42 = vector.extract_strided_slice %37 {offsets = [0, 0], sizes = [1, 512], strides = [1, 1]} : vector<8x512xf32> to vector<1x512xf32>
    %43 = arith.addf %41, %42 : vector<1x512xf32>
    %44 = vector.extract_strided_slice %43 {offsets = [0, 0], sizes = [1, 128], strides = [1, 1]} : vector<1x512xf32> to vector<1x128xf32>
    %45 = arith.negf %44 : vector<1x128xf32>
    %46 = math.exp %45 : vector<1x128xf32>
    %cst_25 = arith.constant 1.000000e+00 : f32
    %47 = vector.broadcast %cst_25 : f32 to vector<1x128xf32>
    %48 = arith.addf %47, %46 : vector<1x128xf32>
    %49 = arith.divf %47, %48 : vector<1x128xf32>
    %50 = vector.extract_strided_slice %43 {offsets = [0, 128], sizes = [1, 128], strides = [1, 1]} : vector<1x512xf32> to vector<1x128xf32>
    %51 = arith.negf %50 : vector<1x128xf32>
    %52 = math.exp %51 : vector<1x128xf32>
    %cst_26 = arith.constant 1.000000e+00 : f32
    %53 = vector.broadcast %cst_26 : f32 to vector<1x128xf32>
    %54 = arith.addf %53, %52 : vector<1x128xf32>
    %55 = arith.divf %53, %54 : vector<1x128xf32>
    %56 = vector.extract_strided_slice %43 {offsets = [0, 256], sizes = [1, 128], strides = [1, 1]} : vector<1x512xf32> to vector<1x128xf32>
    %57 = math.tanh %56 : vector<1x128xf32>
    %58 = vector.extract_strided_slice %43 {offsets = [0, 384], sizes = [1, 128], strides = [1, 1]} : vector<1x512xf32> to vector<1x128xf32>
    %59 = arith.negf %58 : vector<1x128xf32>
    %60 = math.exp %59 : vector<1x128xf32>
    %cst_27 = arith.constant 1.000000e+00 : f32
    %61 = vector.broadcast %cst_27 : f32 to vector<1x128xf32>
    %62 = arith.addf %61, %60 : vector<1x128xf32>
    %63 = arith.divf %61, %62 : vector<1x128xf32>
    %64 = arith.mulf %55, %39 : vector<1x128xf32>
    %65 = arith.mulf %49, %57 : vector<1x128xf32>
    %66 = arith.addf %64, %65 : vector<1x128xf32>
    %67 = math.tanh %66 : vector<1x128xf32>
    %68 = arith.mulf %63, %67 : vector<1x128xf32>
    %c0_28 = arith.constant 0 : index
    %c0_29 = arith.constant 0 : index
    %69 = vector.load %arg4[%c0_28, %c0_29] : memref<128x512xf32, #tpu.memory_space<vmem>>, vector<128x512xf32>
    %cst_30 = arith.constant dense<0.000000e+00> : vector<1x512xf32>
    %70 = tpu.matmul %68, %69, %cst_30 {dimension_numbers = #tpu.dot_dimension_numbers<[1], [0], [0], [1], [0, 0, 1, 1], [], []>} : vector<1x128xf32>, vector<128x512xf32>, vector<1x512xf32> -> vector<1x512xf32>
    %71 = vector.extract_strided_slice %37 {offsets = [1, 0], sizes = [1, 512], strides = [1, 1]} : vector<8x512xf32> to vector<1x512xf32>
    %72 = arith.addf %70, %71 : vector<1x512xf32>
    %73 = vector.extract_strided_slice %72 {offsets = [0, 0], sizes = [1, 128], strides = [1, 1]} : vector<1x512xf32> to vector<1x128xf32>
    %74 = arith.negf %73 : vector<1x128xf32>
    %75 = math.exp %74 : vector<1x128xf32>
    %cst_31 = arith.constant 1.000000e+00 : f32
    %76 = vector.broadcast %cst_31 : f32 to vector<1x128xf32>
    %77 = arith.addf %76, %75 : vector<1x128xf32>
    %78 = arith.divf %76, %77 : vector<1x128xf32>
    %79 = vector.extract_strided_slice %72 {offsets = [0, 128], sizes = [1, 128], strides = [1, 1]} : vector<1x512xf32> to vector<1x128xf32>
    %80 = arith.negf %79 : vector<1x128xf32>
    %81 = math.exp %80 : vector<1x128xf32>
    %cst_32 = arith.constant 1.000000e+00 : f32
    %82 = vector.broadcast %cst_32 : f32 to vector<1x128xf32>
    %83 = arith.addf %82, %81 : vector<1x128xf32>
    %84 = arith.divf %82, %83 : vector<1x128xf32>
    %85 = vector.extract_strided_slice %72 {offsets = [0, 256], sizes = [1, 128], strides = [1, 1]} : vector<1x512xf32> to vector<1x128xf32>
    %86 = math.tanh %85 : vector<1x128xf32>
    %87 = vector.extract_strided_slice %72 {offsets = [0, 384], sizes = [1, 128], strides = [1, 1]} : vector<1x512xf32> to vector<1x128xf32>
    %88 = arith.negf %87 : vector<1x128xf32>
    %89 = math.exp %88 : vector<1x128xf32>
    %cst_33 = arith.constant 1.000000e+00 : f32
    %90 = vector.broadcast %cst_33 : f32 to vector<1x128xf32>
    %91 = arith.addf %90, %89 : vector<1x128xf32>
    %92 = arith.divf %90, %91 : vector<1x128xf32>
    %93 = arith.mulf %84, %66 : vector<1x128xf32>
    %94 = arith.mulf %78, %86 : vector<1x128xf32>
    %95 = arith.addf %93, %94 : vector<1x128xf32>
    %96 = math.tanh %95 : vector<1x128xf32>
    %97 = arith.mulf %92, %96 : vector<1x128xf32>
    %c0_34 = arith.constant 0 : index
    %c0_35 = arith.constant 0 : index
    %98 = vector.load %arg4[%c0_34, %c0_35] : memref<128x512xf32, #tpu.memory_space<vmem>>, vector<128x512xf32>
    %cst_36 = arith.constant dense<0.000000e+00> : vector<1x512xf32>
    %99 = tpu.matmul %97, %98, %cst_36 {dimension_numbers = #tpu.dot_dimension_numbers<[1], [0], [0], [1], [0, 0, 1, 1], [], []>} : vector<1x128xf32>, vector<128x512xf32>, vector<1x512xf32> -> vector<1x512xf32>
    %100 = vector.extract_strided_slice %37 {offsets = [2, 0], sizes = [1, 512], strides = [1, 1]} : vector<8x512xf32> to vector<1x512xf32>
    %101 = arith.addf %99, %100 : vector<1x512xf32>
    %102 = vector.extract_strided_slice %101 {offsets = [0, 0], sizes = [1, 128], strides = [1, 1]} : vector<1x512xf32> to vector<1x128xf32>
    %103 = arith.negf %102 : vector<1x128xf32>
    %104 = math.exp %103 : vector<1x128xf32>
    %cst_37 = arith.constant 1.000000e+00 : f32
    %105 = vector.broadcast %cst_37 : f32 to vector<1x128xf32>
    %106 = arith.addf %105, %104 : vector<1x128xf32>
    %107 = arith.divf %105, %106 : vector<1x128xf32>
    %108 = vector.extract_strided_slice %101 {offsets = [0, 128], sizes = [1, 128], strides = [1, 1]} : vector<1x512xf32> to vector<1x128xf32>
    %109 = arith.negf %108 : vector<1x128xf32>
    %110 = math.exp %109 : vector<1x128xf32>
    %cst_38 = arith.constant 1.000000e+00 : f32
    %111 = vector.broadcast %cst_38 : f32 to vector<1x128xf32>
    %112 = arith.addf %111, %110 : vector<1x128xf32>
    %113 = arith.divf %111, %112 : vector<1x128xf32>
    %114 = vector.extract_strided_slice %101 {offsets = [0, 256], sizes = [1, 128], strides = [1, 1]} : vector<1x512xf32> to vector<1x128xf32>
    %115 = math.tanh %114 : vector<1x128xf32>
    %116 = vector.extract_strided_slice %101 {offsets = [0, 384], sizes = [1, 128], strides = [1, 1]} : vector<1x512xf32> to vector<1x128xf32>
    %117 = arith.negf %116 : vector<1x128xf32>
    %118 = math.exp %117 : vector<1x128xf32>
    %cst_39 = arith.constant 1.000000e+00 : f32
    %119 = vector.broadcast %cst_39 : f32 to vector<1x128xf32>
    %120 = arith.addf %119, %118 : vector<1x128xf32>
    %121 = arith.divf %119, %120 : vector<1x128xf32>
    %122 = arith.mulf %113, %95 : vector<1x128xf32>
    %123 = arith.mulf %107, %115 : vector<1x128xf32>
    %124 = arith.addf %122, %123 : vector<1x128xf32>
    %125 = math.tanh %124 : vector<1x128xf32>
    %126 = arith.mulf %121, %125 : vector<1x128xf32>
    %c0_40 = arith.constant 0 : index
    %c0_41 = arith.constant 0 : index
    %127 = vector.load %arg4[%c0_40, %c0_41] : memref<128x512xf32, #tpu.memory_space<vmem>>, vector<128x512xf32>
    %cst_42 = arith.constant dense<0.000000e+00> : vector<1x512xf32>
    %128 = tpu.matmul %126, %127, %cst_42 {dimension_numbers = #tpu.dot_dimension_numbers<[1], [0], [0], [1], [0, 0, 1, 1], [], []>} : vector<1x128xf32>, vector<128x512xf32>, vector<1x512xf32> -> vector<1x512xf32>
    %129 = vector.extract_strided_slice %37 {offsets = [3, 0], sizes = [1, 512], strides = [1, 1]} : vector<8x512xf32> to vector<1x512xf32>
    %130 = arith.addf %128, %129 : vector<1x512xf32>
    %131 = vector.extract_strided_slice %130 {offsets = [0, 0], sizes = [1, 128], strides = [1, 1]} : vector<1x512xf32> to vector<1x128xf32>
    %132 = arith.negf %131 : vector<1x128xf32>
    %133 = math.exp %132 : vector<1x128xf32>
    %cst_43 = arith.constant 1.000000e+00 : f32
    %134 = vector.broadcast %cst_43 : f32 to vector<1x128xf32>
    %135 = arith.addf %134, %133 : vector<1x128xf32>
    %136 = arith.divf %134, %135 : vector<1x128xf32>
    %137 = vector.extract_strided_slice %130 {offsets = [0, 128], sizes = [1, 128], strides = [1, 1]} : vector<1x512xf32> to vector<1x128xf32>
    %138 = arith.negf %137 : vector<1x128xf32>
    %139 = math.exp %138 : vector<1x128xf32>
    %cst_44 = arith.constant 1.000000e+00 : f32
    %140 = vector.broadcast %cst_44 : f32 to vector<1x128xf32>
    %141 = arith.addf %140, %139 : vector<1x128xf32>
    %142 = arith.divf %140, %141 : vector<1x128xf32>
    %143 = vector.extract_strided_slice %130 {offsets = [0, 256], sizes = [1, 128], strides = [1, 1]} : vector<1x512xf32> to vector<1x128xf32>
    %144 = math.tanh %143 : vector<1x128xf32>
    %145 = vector.extract_strided_slice %130 {offsets = [0, 384], sizes = [1, 128], strides = [1, 1]} : vector<1x512xf32> to vector<1x128xf32>
    %146 = arith.negf %145 : vector<1x128xf32>
    %147 = math.exp %146 : vector<1x128xf32>
    %cst_45 = arith.constant 1.000000e+00 : f32
    %148 = vector.broadcast %cst_45 : f32 to vector<1x128xf32>
    %149 = arith.addf %148, %147 : vector<1x128xf32>
    %150 = arith.divf %148, %149 : vector<1x128xf32>
    %151 = arith.mulf %142, %124 : vector<1x128xf32>
    %152 = arith.mulf %136, %144 : vector<1x128xf32>
    %153 = arith.addf %151, %152 : vector<1x128xf32>
    %154 = math.tanh %153 : vector<1x128xf32>
    %155 = arith.mulf %150, %154 : vector<1x128xf32>
    %c0_46 = arith.constant 0 : index
    %c0_47 = arith.constant 0 : index
    %156 = vector.load %arg4[%c0_46, %c0_47] : memref<128x512xf32, #tpu.memory_space<vmem>>, vector<128x512xf32>
    %cst_48 = arith.constant dense<0.000000e+00> : vector<1x512xf32>
    %157 = tpu.matmul %155, %156, %cst_48 {dimension_numbers = #tpu.dot_dimension_numbers<[1], [0], [0], [1], [0, 0, 1, 1], [], []>} : vector<1x128xf32>, vector<128x512xf32>, vector<1x512xf32> -> vector<1x512xf32>
    %158 = vector.extract_strided_slice %37 {offsets = [4, 0], sizes = [1, 512], strides = [1, 1]} : vector<8x512xf32> to vector<1x512xf32>
    %159 = arith.addf %157, %158 : vector<1x512xf32>
    %160 = vector.extract_strided_slice %159 {offsets = [0, 0], sizes = [1, 128], strides = [1, 1]} : vector<1x512xf32> to vector<1x128xf32>
    %161 = arith.negf %160 : vector<1x128xf32>
    %162 = math.exp %161 : vector<1x128xf32>
    %cst_49 = arith.constant 1.000000e+00 : f32
    %163 = vector.broadcast %cst_49 : f32 to vector<1x128xf32>
    %164 = arith.addf %163, %162 : vector<1x128xf32>
    %165 = arith.divf %163, %164 : vector<1x128xf32>
    %166 = vector.extract_strided_slice %159 {offsets = [0, 128], sizes = [1, 128], strides = [1, 1]} : vector<1x512xf32> to vector<1x128xf32>
    %167 = arith.negf %166 : vector<1x128xf32>
    %168 = math.exp %167 : vector<1x128xf32>
    %cst_50 = arith.constant 1.000000e+00 : f32
    %169 = vector.broadcast %cst_50 : f32 to vector<1x128xf32>
    %170 = arith.addf %169, %168 : vector<1x128xf32>
    %171 = arith.divf %169, %170 : vector<1x128xf32>
    %172 = vector.extract_strided_slice %159 {offsets = [0, 256], sizes = [1, 128], strides = [1, 1]} : vector<1x512xf32> to vector<1x128xf32>
    %173 = math.tanh %172 : vector<1x128xf32>
    %174 = vector.extract_strided_slice %159 {offsets = [0, 384], sizes = [1, 128], strides = [1, 1]} : vector<1x512xf32> to vector<1x128xf32>
    %175 = arith.negf %174 : vector<1x128xf32>
    %176 = math.exp %175 : vector<1x128xf32>
    %cst_51 = arith.constant 1.000000e+00 : f32
    %177 = vector.broadcast %cst_51 : f32 to vector<1x128xf32>
    %178 = arith.addf %177, %176 : vector<1x128xf32>
    %179 = arith.divf %177, %178 : vector<1x128xf32>
    %180 = arith.mulf %171, %153 : vector<1x128xf32>
    %181 = arith.mulf %165, %173 : vector<1x128xf32>
    %182 = arith.addf %180, %181 : vector<1x128xf32>
    %183 = math.tanh %182 : vector<1x128xf32>
    %184 = arith.mulf %179, %183 : vector<1x128xf32>
    %c0_52 = arith.constant 0 : index
    %c0_53 = arith.constant 0 : index
    %185 = vector.load %arg4[%c0_52, %c0_53] : memref<128x512xf32, #tpu.memory_space<vmem>>, vector<128x512xf32>
    %cst_54 = arith.constant dense<0.000000e+00> : vector<1x512xf32>
    %186 = tpu.matmul %184, %185, %cst_54 {dimension_numbers = #tpu.dot_dimension_numbers<[1], [0], [0], [1], [0, 0, 1, 1], [], []>} : vector<1x128xf32>, vector<128x512xf32>, vector<1x512xf32> -> vector<1x512xf32>
    %187 = vector.extract_strided_slice %37 {offsets = [5, 0], sizes = [1, 512], strides = [1, 1]} : vector<8x512xf32> to vector<1x512xf32>
    %188 = arith.addf %186, %187 : vector<1x512xf32>
    %189 = vector.extract_strided_slice %188 {offsets = [0, 0], sizes = [1, 128], strides = [1, 1]} : vector<1x512xf32> to vector<1x128xf32>
    %190 = arith.negf %189 : vector<1x128xf32>
    %191 = math.exp %190 : vector<1x128xf32>
    %cst_55 = arith.constant 1.000000e+00 : f32
    %192 = vector.broadcast %cst_55 : f32 to vector<1x128xf32>
    %193 = arith.addf %192, %191 : vector<1x128xf32>
    %194 = arith.divf %192, %193 : vector<1x128xf32>
    %195 = vector.extract_strided_slice %188 {offsets = [0, 128], sizes = [1, 128], strides = [1, 1]} : vector<1x512xf32> to vector<1x128xf32>
    %196 = arith.negf %195 : vector<1x128xf32>
    %197 = math.exp %196 : vector<1x128xf32>
    %cst_56 = arith.constant 1.000000e+00 : f32
    %198 = vector.broadcast %cst_56 : f32 to vector<1x128xf32>
    %199 = arith.addf %198, %197 : vector<1x128xf32>
    %200 = arith.divf %198, %199 : vector<1x128xf32>
    %201 = vector.extract_strided_slice %188 {offsets = [0, 256], sizes = [1, 128], strides = [1, 1]} : vector<1x512xf32> to vector<1x128xf32>
    %202 = math.tanh %201 : vector<1x128xf32>
    %203 = vector.extract_strided_slice %188 {offsets = [0, 384], sizes = [1, 128], strides = [1, 1]} : vector<1x512xf32> to vector<1x128xf32>
    %204 = arith.negf %203 : vector<1x128xf32>
    %205 = math.exp %204 : vector<1x128xf32>
    %cst_57 = arith.constant 1.000000e+00 : f32
    %206 = vector.broadcast %cst_57 : f32 to vector<1x128xf32>
    %207 = arith.addf %206, %205 : vector<1x128xf32>
    %208 = arith.divf %206, %207 : vector<1x128xf32>
    %209 = arith.mulf %200, %182 : vector<1x128xf32>
    %210 = arith.mulf %194, %202 : vector<1x128xf32>
    %211 = arith.addf %209, %210 : vector<1x128xf32>
    %212 = math.tanh %211 : vector<1x128xf32>
    %213 = arith.mulf %208, %212 : vector<1x128xf32>
    %c0_58 = arith.constant 0 : index
    %c0_59 = arith.constant 0 : index
    %214 = vector.load %arg4[%c0_58, %c0_59] : memref<128x512xf32, #tpu.memory_space<vmem>>, vector<128x512xf32>
    %cst_60 = arith.constant dense<0.000000e+00> : vector<1x512xf32>
    %215 = tpu.matmul %213, %214, %cst_60 {dimension_numbers = #tpu.dot_dimension_numbers<[1], [0], [0], [1], [0, 0, 1, 1], [], []>} : vector<1x128xf32>, vector<128x512xf32>, vector<1x512xf32> -> vector<1x512xf32>
    %216 = vector.extract_strided_slice %37 {offsets = [6, 0], sizes = [1, 512], strides = [1, 1]} : vector<8x512xf32> to vector<1x512xf32>
    %217 = arith.addf %215, %216 : vector<1x512xf32>
    %218 = vector.extract_strided_slice %217 {offsets = [0, 0], sizes = [1, 128], strides = [1, 1]} : vector<1x512xf32> to vector<1x128xf32>
    %219 = arith.negf %218 : vector<1x128xf32>
    %220 = math.exp %219 : vector<1x128xf32>
    %cst_61 = arith.constant 1.000000e+00 : f32
    %221 = vector.broadcast %cst_61 : f32 to vector<1x128xf32>
    %222 = arith.addf %221, %220 : vector<1x128xf32>
    %223 = arith.divf %221, %222 : vector<1x128xf32>
    %224 = vector.extract_strided_slice %217 {offsets = [0, 128], sizes = [1, 128], strides = [1, 1]} : vector<1x512xf32> to vector<1x128xf32>
    %225 = arith.negf %224 : vector<1x128xf32>
    %226 = math.exp %225 : vector<1x128xf32>
    %cst_62 = arith.constant 1.000000e+00 : f32
    %227 = vector.broadcast %cst_62 : f32 to vector<1x128xf32>
    %228 = arith.addf %227, %226 : vector<1x128xf32>
    %229 = arith.divf %227, %228 : vector<1x128xf32>
    %230 = vector.extract_strided_slice %217 {offsets = [0, 256], sizes = [1, 128], strides = [1, 1]} : vector<1x512xf32> to vector<1x128xf32>
    %231 = math.tanh %230 : vector<1x128xf32>
    %232 = vector.extract_strided_slice %217 {offsets = [0, 384], sizes = [1, 128], strides = [1, 1]} : vector<1x512xf32> to vector<1x128xf32>
    %233 = arith.negf %232 : vector<1x128xf32>
    %234 = math.exp %233 : vector<1x128xf32>
    %cst_63 = arith.constant 1.000000e+00 : f32
    %235 = vector.broadcast %cst_63 : f32 to vector<1x128xf32>
    %236 = arith.addf %235, %234 : vector<1x128xf32>
    %237 = arith.divf %235, %236 : vector<1x128xf32>
    %238 = arith.mulf %229, %211 : vector<1x128xf32>
    %239 = arith.mulf %223, %231 : vector<1x128xf32>
    %240 = arith.addf %238, %239 : vector<1x128xf32>
    %241 = math.tanh %240 : vector<1x128xf32>
    %242 = arith.mulf %237, %241 : vector<1x128xf32>
    %c0_64 = arith.constant 0 : index
    %c0_65 = arith.constant 0 : index
    %243 = vector.load %arg4[%c0_64, %c0_65] : memref<128x512xf32, #tpu.memory_space<vmem>>, vector<128x512xf32>
    %cst_66 = arith.constant dense<0.000000e+00> : vector<1x512xf32>
    %244 = tpu.matmul %242, %243, %cst_66 {dimension_numbers = #tpu.dot_dimension_numbers<[1], [0], [0], [1], [0, 0, 1, 1], [], []>} : vector<1x128xf32>, vector<128x512xf32>, vector<1x512xf32> -> vector<1x512xf32>
    %245 = vector.extract_strided_slice %37 {offsets = [7, 0], sizes = [1, 512], strides = [1, 1]} : vector<8x512xf32> to vector<1x512xf32>
    %246 = arith.addf %244, %245 : vector<1x512xf32>
    %247 = vector.extract_strided_slice %246 {offsets = [0, 0], sizes = [1, 128], strides = [1, 1]} : vector<1x512xf32> to vector<1x128xf32>
    %248 = arith.negf %247 : vector<1x128xf32>
    %249 = math.exp %248 : vector<1x128xf32>
    %cst_67 = arith.constant 1.000000e+00 : f32
    %250 = vector.broadcast %cst_67 : f32 to vector<1x128xf32>
    %251 = arith.addf %250, %249 : vector<1x128xf32>
    %252 = arith.divf %250, %251 : vector<1x128xf32>
    %253 = vector.extract_strided_slice %246 {offsets = [0, 128], sizes = [1, 128], strides = [1, 1]} : vector<1x512xf32> to vector<1x128xf32>
    %254 = arith.negf %253 : vector<1x128xf32>
    %255 = math.exp %254 : vector<1x128xf32>
    %cst_68 = arith.constant 1.000000e+00 : f32
    %256 = vector.broadcast %cst_68 : f32 to vector<1x128xf32>
    %257 = arith.addf %256, %255 : vector<1x128xf32>
    %258 = arith.divf %256, %257 : vector<1x128xf32>
    %259 = vector.extract_strided_slice %246 {offsets = [0, 256], sizes = [1, 128], strides = [1, 1]} : vector<1x512xf32> to vector<1x128xf32>
    %260 = math.tanh %259 : vector<1x128xf32>
    %261 = vector.extract_strided_slice %246 {offsets = [0, 384], sizes = [1, 128], strides = [1, 1]} : vector<1x512xf32> to vector<1x128xf32>
    %262 = arith.negf %261 : vector<1x128xf32>
    %263 = math.exp %262 : vector<1x128xf32>
    %cst_69 = arith.constant 1.000000e+00 : f32
    %264 = vector.broadcast %cst_69 : f32 to vector<1x128xf32>
    %265 = arith.addf %264, %263 : vector<1x128xf32>
    %266 = arith.divf %264, %265 : vector<1x128xf32>
    %267 = arith.mulf %258, %240 : vector<1x128xf32>
    %268 = arith.mulf %252, %260 : vector<1x128xf32>
    %269 = arith.addf %267, %268 : vector<1x128xf32>
    %270 = math.tanh %269 : vector<1x128xf32>
    %271 = arith.mulf %266, %270 : vector<1x128xf32>
    %272 = tpu.concatenate %68, %97, %126, %155, %184, %213, %242, %271 in 0 : vector<1x128xf32>, vector<1x128xf32>, vector<1x128xf32>, vector<1x128xf32>, vector<1x128xf32>, vector<1x128xf32>, vector<1x128xf32>, vector<1x128xf32> -> vector<8x128xf32>
    %c0_70 = arith.constant 0 : index
    %c0_71 = arith.constant 0 : index
    %273 = vector.load %arg6[%c0_70, %c0_71] : memref<128x128xf32, #tpu.memory_space<vmem>>, vector<128x128xf32>
    %cst_72 = arith.constant dense<0.000000e+00> : vector<8x128xf32>
    %274 = tpu.matmul %272, %273, %cst_72 {dimension_numbers = #tpu.dot_dimension_numbers<[1], [0], [0], [1], [0, 0, 1, 1], [], []>} : vector<8x128xf32>, vector<128x128xf32>, vector<8x128xf32> -> vector<8x128xf32>
    %c0_73 = arith.constant 0 : index
    %c0_74 = arith.constant 0 : index
    %275 = vector.load %arg7[%c0_73, %c0_74] : memref<1x128xf32, #tpu.memory_space<vmem>>, vector<1x128xf32>
    %276 = vector.broadcast %275 : vector<1x128xf32> to vector<8x128xf32>
    %277 = arith.addf %274, %276 : vector<8x128xf32>
    %c0_75 = arith.constant 0 : index
    %c0_76 = arith.constant 0 : index
    %278 = vector.load %arg8[%c0_75, %c0_76] : memref<8x128xf32, #tpu.memory_space<vmem>>, vector<8x128xf32>
    tpu.vector_store %arg8[%c0_75, %c0_76], %277 {strides = array<i32>} : memref<8x128xf32, #tpu.memory_space<vmem>>, vector<8x128xf32>,
    return
  }
  func.func @transform_0(%arg0: i32, %arg1: memref<8xi32, #tpu.memory_space<smem>>) -> (i32, i32, i32) {
    %c0_i32 = arith.constant 0 : i32
    %c0_i32_0 = arith.constant 0 : i32
    %c0_i32_1 = arith.constant 0 : i32
    %c0_i32_2 = arith.constant 0 : i32
    return %c0_i32, %c0_i32_0, %c0_i32_1 : i32, i32, i32
  }
  func.func @transform_1(%arg0: i32, %arg1: memref<8xi32, #tpu.memory_space<smem>>) -> (i32, i32) {
    %c0_i32 = arith.constant 0 : i32
    %c0_i32_0 = arith.constant 0 : i32
    %c0_i32_1 = arith.constant 0 : i32
    return %c0_i32, %c0_i32_0 : i32, i32
  }
  func.func @transform_2(%arg0: i32, %arg1: memref<8xi32, #tpu.memory_space<smem>>) -> (i32, i32) {
    %c0_i32 = arith.constant 0 : i32
    %c0_i32_0 = arith.constant 0 : i32
    %c0_i32_1 = arith.constant 0 : i32
    return %c0_i32, %c0_i32_0 : i32, i32
  }
  func.func @transform_3(%arg0: i32, %arg1: memref<8xi32, #tpu.memory_space<smem>>) -> (i32, i32) {
    %c0_i32 = arith.constant 0 : i32
    %c0_i32_0 = arith.constant 0 : i32
    %c0_i32_1 = arith.constant 0 : i32
    return %c0_i32, %c0_i32_0 : i32, i32
  }
  func.func @transform_4(%arg0: i32, %arg1: memref<8xi32, #tpu.memory_space<smem>>) -> (i32, i32) {
    %c0_i32 = arith.constant 0 : i32
    %c0_i32_0 = arith.constant 0 : i32
    %c0_i32_1 = arith.constant 0 : i32
    return %c0_i32, %c0_i32_0 : i32, i32
  }
  func.func @transform_5(%arg0: i32, %arg1: memref<8xi32, #tpu.memory_space<smem>>) -> (i32, i32) {
    %c0_i32 = arith.constant 0 : i32
    %c0_i32_0 = arith.constant 0 : i32
    %c0_i32_1 = arith.constant 0 : i32
    return %c0_i32, %c0_i32_0 : i32, i32
  }
  func.func @transform_6(%arg0: i32, %arg1: memref<8xi32, #tpu.memory_space<smem>>) -> (i32, i32) {
    %c0_i32 = arith.constant 0 : i32
    %c0_i32_0 = arith.constant 0 : i32
    %c0_i32_1 = arith.constant 0 : i32
    return %c0_i32, %c0_i32_0 : i32, i32
  }
}

</mosaic_0001>

<llo_original>
// kernel: tpu_custom_call.1
$region0: #{tpu_custom_call.1}
  #allocation0 [shape = 'u32[]', space=smem, size = 0x4, offset = 0x4, fixed_abs, tag = 'smem constant byte address 0x4 - core index']
  #allocation1 [shape = 'u32[72,128]{1,0:T(1,128)}', space=vmem, size = 0x9000, scoped, tag = 'internal scratch']
  #allocation2 [shape = 's32[1]{0}', space=sflag, size = 0x4, scoped, tag = 'scoped memory for tpu_custom_call.1']
  #allocation3 [shape = 'u8[512]{0}', space=smem, size = 0x200, scoped, tag = 'prefetched SMEM operand 0']
  %s0 = inlined_call_operand.hbm [shape: s32[8], index: 0, kind: input, shape index: {}]
  %s1 = inlined_call_operand.hbm [shape: f32[10,1,128], index: 1, kind: input, shape index: {}]
  %s2 = inlined_call_operand.hbm [shape: f32[128,512], index: 2, kind: input, shape index: {}]
  %s3 = inlined_call_operand.hbm [shape: f32[128,512], index: 3, kind: input, shape index: {}]
  %s4 = inlined_call_operand.hbm [shape: f32[1,512], index: 4, kind: input, shape index: {}]
  %s5 = inlined_call_operand.hbm [shape: f32[128,128], index: 5, kind: input, shape index: {}]
  %s6 = inlined_call_operand.vmem [shape: f32[1,128], index: 6, kind: input, shape index: {}]
  %s7 = inlined_call_operand.hbm [shape: f32[8,128], index: 7, kind: output, shape index: {}]
  %s8 = sld [smem:[#allocation0]]
  $region54: #{tpu_custom_call.1} parent=0
    _
  %s10 = ssub.s32 1, %s8
  %s11 = scalar_select 0, %s10, %s8
  %s13 = sshll.u32 %s0, 4
  %s14 = int_to_ptr.hbm [resolvable:$true] %s13
  %16 = dma.hbm_to_smem %s14, 16, [#allocation3], [#allocation2]
  %18 = dma.done [#allocation2], 16
  %19 = sfence
  $region1: #{tpu_custom_call.1} parent=0
    #allocation4 [shape = 'u8[5120]{0}', space=vmem, size = 0x1400, scoped, tag = 'input window, operand 1, single buffered']
    #allocation5 [shape = 's32[1]{0}', space=sflag, size = 0x4, scoped, tag = 'scoped memory for tpu_custom_call.1']
    #allocation6 [shape = 's32[1]{0}', space=sflag, size = 0x4, scoped, tag = 'scoped memory for tpu_custom_call.1']
    #allocation7 [shape = 'u8[262144]{0}', space=vmem, size = 0x40000, scoped, tag = 'input window, operand 2, single buffered']
    #allocation8 [shape = 's32[1]{0}', space=sflag, size = 0x4, scoped, tag = 'scoped memory for tpu_custom_call.1']
    #allocation9 [shape = 'u8[262144]{0}', space=vmem, size = 0x40000, scoped, tag = 'input window, operand 3, single buffered']
    #allocation10 [shape = 'u8[2048]{0}', space=vmem, size = 0x800, scoped, tag = 'input window, operand 4, single buffered']
    #allocation11 [shape = 's32[1]{0}', space=sflag, size = 0x4, scoped, tag = 'scoped memory for tpu_custom_call.1']
    #allocation12 [shape = 'u8[65536]{0}', space=vmem, size = 0x10000, scoped, tag = 'input window, operand 5, single buffered']
    #allocation13 [shape = 'u8[4096]{0}', space=vmem, size = 0x1000, scoped, tag = 'output window, operand 0, single buffered']
    %20 = vsyncpa [#allocation5], 0
    %21 = vsyncpa [#allocation8], 0
    %22 = vsyncpa [#allocation11], 0
    %23 = vsyncpa [#allocation6], 0
    // Predicated region
    $region2: #{tpu_custom_call.1} parent=1 // pred_check
      _
    $region3: #{tpu_custom_call.1} parent=1 // pred_check_branch
      %25 = sbr.rel (0) target = $region5
    $region4: #{tpu_custom_call.1} parent=1 // pred_region
      %27 = vsyncadd [#allocation5], 0
      %s28 = sshll.u32 %s1, 4
      %s29 = int_to_ptr.hbm [resolvable:$true] %s28
      %s30 = sshll.u32 [#allocation4], 4
      %s31 = int_to_ptr.vmem [resolvable:$true] %s30
      %36 = dma.hbm_to_vmem [thread:$0]  %s29, 160, %s31, [#allocation5], 16, 16, 1
    $region5: #{tpu_custom_call.1} parent=1 // pred_fallthru
      _
    // Predicated region
    $region6: #{tpu_custom_call.1} parent=1 // pred_check
      _
    $region7: #{tpu_custom_call.1} parent=1 // pred_check_branch
      %38 = sbr.rel (0) target = $region9
    $region8: #{tpu_custom_call.1} parent=1 // pred_region
      %40 = vsyncadd [#allocation8], 0
      %s41 = sshll.u32 %s2, 4
      %s42 = int_to_ptr.hbm [resolvable:$true] %s41
      %s43 = sshll.u32 [#allocation7], 4
      %s44 = int_to_ptr.vmem [resolvable:$true] %s43
      %49 = dma.hbm_to_vmem [thread:$0]  %s42, 8192, %s44, [#allocation8], 512, 512, 32
    $region9: #{tpu_custom_call.1} parent=1 // pred_fallthru
      _
    // Predicated region
    $region10: #{tpu_custom_call.1} parent=1 // pred_check
      _
    $region11: #{tpu_custom_call.1} parent=1 // pred_check_branch
      %51 = sbr.rel (0) target = $region13
    $region12: #{tpu_custom_call.1} parent=1 // pred_region
      %53 = vsyncadd [#allocation8], 0
      %s54 = sshll.u32 %s3, 4
      %s55 = int_to_ptr.hbm [resolvable:$true] %s54
      %s56 = sshll.u32 [#allocation9], 4
      %s57 = int_to_ptr.vmem [resolvable:$true] %s56
      %62 = dma.hbm_to_vmem [thread:$0]  %s55, 8192, %s57, [#allocation8], 512, 512, 32
    $region13: #{tpu_custom_call.1} parent=1 // pred_fallthru
      _
    // Predicated region
    $region14: #{tpu_custom_call.1} parent=1 // pred_check
      _
    $region15: #{tpu_custom_call.1} parent=1 // pred_check_branch
      %64 = sbr.rel (0) target = $region17
    $region16: #{tpu_custom_call.1} parent=1 // pred_region
      %66 = vsyncadd [#allocation11], 0
      %s68 = sshll.u32 %s4, 4
      %s69 = int_to_ptr.hbm [resolvable:$true] %s68
      %s70 = sshll.u32 [#allocation10], 4
      %s71 = int_to_ptr.vmem [resolvable:$true] %s70
      %73 = dma.hbm_to_vmem [thread:$0]  %s69, 64, %s71, [#allocation11]
    $region17: #{tpu_custom_call.1} parent=1 // pred_fallthru
      _
    // Predicated region
    $region18: #{tpu_custom_call.1} parent=1 // pred_check
      _
    $region19: #{tpu_custom_call.1} parent=1 // pred_check_branch
      %75 = sbr.rel (0) target = $region21
    $region20: #{tpu_custom_call.1} parent=1 // pred_region
      %77 = vsyncadd [#allocation11], 0
      %s78 = sshll.u32 %s5, 4
      %s79 = int_to_ptr.hbm [resolvable:$true] %s78
      %s80 = sshll.u32 [#allocation12], 4
      %s81 = int_to_ptr.vmem [resolvable:$true] %s80
      %86 = dma.hbm_to_vmem [thread:$0]  %s79, 2048, %s81, [#allocation11], 128, 128, 8
    $region21: #{tpu_custom_call.1} parent=1 // pred_fallthru
      _
    // Predicated region
    $region22: #{tpu_custom_call.1} parent=1 // pred_check
      _
    $region23: #{tpu_custom_call.1} parent=1 // pred_check_branch
      %88 = sbr.rel (0) target = $region25
    $region24: #{tpu_custom_call.1} parent=1 // pred_region
      _
    $region25: #{tpu_custom_call.1} parent=1 // pred_fallthru
      _
    // Predicated region
    $region26: #{tpu_custom_call.1} parent=1 // pred_check
      _
    $region27: #{tpu_custom_call.1} parent=1 // pred_check_branch
      %90 = sbr.rel (0) target = $region29
    $region28: #{tpu_custom_call.1} parent=1 // pred_region
      %92 = dma.done [#allocation5], 160
    $region29: #{tpu_custom_call.1} parent=1 // pred_fallthru
      _
    // Predicated region
    $region30: #{tpu_custom_call.1} parent=1 // pred_check
      _
    $region31: #{tpu_custom_call.1} parent=1 // pred_check_branch
      %94 = sbr.rel (0) target = $region33
    $region32: #{tpu_custom_call.1} parent=1 // pred_region
      %96 = dma.done [#allocation8], 8192
    $region33: #{tpu_custom_call.1} parent=1 // pred_fallthru
      _
    // Predicated region
    $region34: #{tpu_custom_call.1} parent=1 // pred_check
      _
    $region35: #{tpu_custom_call.1} parent=1 // pred_check_branch
      %98 = sbr.rel (0) target = $region37
    $region36: #{tpu_custom_call.1} parent=1 // pred_region
      %100 = dma.done [#allocation8], 8192
    $region37: #{tpu_custom_call.1} parent=1 // pred_fallthru
      _
    // Predicated region
    $region38: #{tpu_custom_call.1} parent=1 // pred_check
      _
    $region39: #{tpu_custom_call.1} parent=1 // pred_check_branch
      %102 = sbr.rel (0) target = $region41
    $region40: #{tpu_custom_call.1} parent=1 // pred_region
      %104 = dma.done [#allocation11], 64
    $region41: #{tpu_custom_call.1} parent=1 // pred_fallthru
      _
    // Predicated region
    $region42: #{tpu_custom_call.1} parent=1 // pred_check
      _
    $region43: #{tpu_custom_call.1} parent=1 // pred_check_branch
      %106 = sbr.rel (0) target = $region45
    $region44: #{tpu_custom_call.1} parent=1 // pred_region
      %108 = dma.done [#allocation11], 2048
    $region45: #{tpu_custom_call.1} parent=1 // pred_fallthru
      _
    %s109 = sld [smem:[#allocation3]]
    %s110 = scalar_lea.vmem [#allocation4], %s109
    %v111 = vld [vmem:[%s110] sm:$0x1]
    %s112 = sld [smem:[#allocation3 + $0x1]]
    %s113 = scalar_lea.vmem [#allocation4], %s112
    %v114 = vld [vmem:[%s113] sm:$0x1]
    %s115 = sld [smem:[#allocation3 + $0x2]]
    %s116 = scalar_lea.vmem [#allocation4], %s115
    %v117 = vld [vmem:[%s116] sm:$0x1]
    %s118 = sld [smem:[#allocation3 + $0x3]]
    %s119 = scalar_lea.vmem [#allocation4], %s118
    %v120 = vld [vmem:[%s119] sm:$0x1]
    %s121 = sld [smem:[#allocation3 + $0x4]]
    %s122 = scalar_lea.vmem [#allocation4], %s121
    %v123 = vld [vmem:[%s122] sm:$0x1]
    %s124 = sld [smem:[#allocation3 + $0x5]]
    %s125 = scalar_lea.vmem [#allocation4], %s124
    %v126 = vld [vmem:[%s125] sm:$0x1]
    %s127 = sld [smem:[#allocation3 + $0x6]]
    %s128 = scalar_lea.vmem [#allocation4], %s127
    %v129 = vld [vmem:[%s128] sm:$0x1]
    %s130 = sld [smem:[#allocation3 + $0x7]]
    %s131 = scalar_lea.vmem [#allocation4], %s130
    %v132 = vld [vmem:[%s131] sm:$0x1]
    %v134 = vperm.slane %v114, 0
    %v137 = vperm.slane %v117, 0
    %v140 = vperm.slane %v120, 0
    %v143 = vperm.slane %v123, 0
    %v146 = vperm.slane %v126, 0
    %v149 = vperm.slane %v129, 0
    %v152 = vperm.slane %v132, 0
    %vm154 = vcmask 1040384
    %v155 = vsel %vm154, %v111, %v134
    %vm156 = vcmask 1041408
    %v157 = vsel %vm156, %v155, %v137
    %vm158 = vcmask 1042432
    %v159 = vsel %vm158, %v157, %v140
    %vm160 = vcmask 1043456
    %v161 = vsel %vm160, %v159, %v143
    %vm162 = vcmask 1044480
    %v163 = vsel %vm162, %v161, %v146
    %vm164 = vcmask 1045504
    %v165 = vsel %vm164, %v163, %v149
    %vm166 = vcmask 1046528
    %v167 = vsel %vm166, %v165, %v152
    %v168 = vld [vmem:[#allocation7] sm:$0xff]
    %v169 = vld [vmem:[#allocation7 + $0x8] sm:$0xff]
    %v170 = vld [vmem:[#allocation7 + $0x10] sm:$0xff]
    %v171 = vld [vmem:[#allocation7 + $0x18] sm:$0xff]
    %v172 = vld [vmem:[#allocation7 + $0x20] sm:$0xff]
    %v173 = vld [vmem:[#allocation7 + $0x28] sm:$0xff]
    %v174 = vld [vmem:[#allocation7 + $0x30] sm:$0xff]
    %v175 = vld [vmem:[#allocation7 + $0x38] sm:$0xff]
    %v176 = vld [vmem:[#allocation7 + $0x40] sm:$0xff]
    %v177 = vld [vmem:[#allocation7 + $0x48] sm:$0xff]
    %v178 = vld [vmem:[#allocation7 + $0x50] sm:$0xff]
    %v179 = vld [vmem:[#allocation7 + $0x58] sm:$0xff]
    %v180 = vld [vmem:[#allocation7 + $0x60] sm:$0xff]
    %v181 = vld [vmem:[#allocation7 + $0x68] sm:$0xff]
    %v182 = vld [vmem:[#allocation7 + $0x70] sm:$0xff]
    %v183 = vld [vmem:[#allocation7 + $0x78] sm:$0xff]
    %v184 = vld [vmem:[#allocation7 + $0x80] sm:$0xff]
    %v185 = vld [vmem:[#allocation7 + $0x88] sm:$0xff]
    %v186 = vld [vmem:[#allocation7 + $0x90] sm:$0xff]
    %v187 = vld [vmem:[#allocation7 + $0x98] sm:$0xff]
    %v188 = vld [vmem:[#allocation7 + $0xa0] sm:$0xff]
    %v189 = vld [vmem:[#allocation7 + $0xa8] sm:$0xff]
    %v190 = vld [vmem:[#allocation7 + $0xb0] sm:$0xff]
    %v191 = vld [vmem:[#allocation7 + $0xb8] sm:$0xff]
    %v192 = vld [vmem:[#allocation7 + $0xc0] sm:$0xff]
    %v193 = vld [vmem:[#allocation7 + $0xc8] sm:$0xff]
    %v194 = vld [vmem:[#allocation7 + $0xd0] sm:$0xff]
    %v195 = vld [vmem:[#allocation7 + $0xd8] sm:$0xff]
    %v196 = vld [vmem:[#allocation7 + $0xe0] sm:$0xff]
    %v197 = vld [vmem:[#allocation7 + $0xe8] sm:$0xff]
    %v198 = vld [vmem:[#allocation7 + $0xf0] sm:$0xff]
    %v199 = vld [vmem:[#allocation7 + $0xf8] sm:$0xff]
    %v200 = vld [vmem:[#allocation7 + $0x100] sm:$0xff]
    %v201 = vld [vmem:[#allocation7 + $0x108] sm:$0xff]
    %v202 = vld [vmem:[#allocation7 + $0x110] sm:$0xff]
    %v203 = vld [vmem:[#allocation7 + $0x118] sm:$0xff]
    %v204 = vld [vmem:[#allocation7 + $0x120] sm:$0xff]
    %v205 = vld [vmem:[#allocation7 + $0x128] sm:$0xff]
    %v206 = vld [vmem:[#allocation7 + $0x130] sm:$0xff]
    %v207 = vld [vmem:[#allocation7 + $0x138] sm:$0xff]
    %v208 = vld [vmem:[#allocation7 + $0x140] sm:$0xff]
    %v209 = vld [vmem:[#allocation7 + $0x148] sm:$0xff]
    %v210 = vld [vmem:[#allocation7 + $0x150] sm:$0xff]
    %v211 = vld [vmem:[#allocation7 + $0x158] sm:$0xff]
    %v212 = vld [vmem:[#allocation7 + $0x160] sm:$0xff]
    %v213 = vld [vmem:[#allocation7 + $0x168] sm:$0xff]
    %v214 = vld [vmem:[#allocation7 + $0x170] sm:$0xff]
    %v215 = vld [vmem:[#allocation7 + $0x178] sm:$0xff]
    %v216 = vld [vmem:[#allocation7 + $0x180] sm:$0xff]
    %v217 = vld [vmem:[#allocation7 + $0x188] sm:$0xff]
    %v218 = vld [vmem:[#allocation7 + $0x190] sm:$0xff]
    %v219 = vld [vmem:[#allocation7 + $0x198] sm:$0xff]
    %v220 = vld [vmem:[#allocation7 + $0x1a0] sm:$0xff]
    %v221 = vld [vmem:[#allocation7 + $0x1a8] sm:$0xff]
    %v222 = vld [vmem:[#allocation7 + $0x1b0] sm:$0xff]
    %v223 = vld [vmem:[#allocation7 + $0x1b8] sm:$0xff]
    %v224 = vld [vmem:[#allocation7 + $0x1c0] sm:$0xff]
    %v225 = vld [vmem:[#allocation7 + $0x1c8] sm:$0xff]
    %v226 = vld [vmem:[#allocation7 + $0x1d0] sm:$0xff]
    %v227 = vld [vmem:[#allocation7 + $0x1d8] sm:$0xff]
    %v228 = vld [vmem:[#allocation7 + $0x1e0] sm:$0xff]
    %v229 = vld [vmem:[#allocation7 + $0x1e8] sm:$0xff]
    %v230 = vld [vmem:[#allocation7 + $0x1f0] sm:$0xff]
    %v231 = vld [vmem:[#allocation7 + $0x1f8] sm:$0xff]
    %v232 = vld [vmem:[#allocation10] sm:$0xf]
    %v234 = vperm.slane %v232, 0
    %v235 = vperm.slane %v232, 1
    %v236 = vperm.slane %v232, 2
    %v237 = vperm.slane %v232, 3
    %242 = vmatpush.msra.mxu0 %v228
    %243 = vmatpush.msra.mxu0 %v224
    %244 = vmatpush.msra.mxu0 %v220
    %245 = vmatpush.msra.mxu0 %v216
    %246 = vmatpush.msra.mxu0 %v212
    %247 = vmatpush.msra.mxu0 %v208
    %248 = vmatpush.msra.mxu0 %v204
    %249 = vmatpush.msra.mxu0 %v200
    %250 = vmatpush.msra.mxu0 %v196
    %251 = vmatpush.msra.mxu0 %v192
    %252 = vmatpush.msra.mxu0 %v188
    %253 = vmatpush.msra.mxu0 %v184
    %254 = vmatpush.msra.mxu0 %v180
    %255 = vmatpush.msra.mxu0 %v176
    %256 = vmatpush.msra.mxu0 %v172
    %257 = vmatpush.msra.mxu0 %v168
    %258 = vmatmul.f32.gmra.mxu0 %v167
    %v259 = vpop.f32.mrf.mxu0
    %v260 = vadd.f32 %v234, %v259
    %261 = vdwg.mxu0
    %262 = vmatpush.msra.mxu0 %v229
    %263 = vmatpush.msra.mxu0 %v225
    %264 = vmatpush.msra.mxu0 %v221
    %265 = vmatpush.msra.mxu0 %v217
    %266 = vmatpush.msra.mxu0 %v213
    %267 = vmatpush.msra.mxu0 %v209
    %268 = vmatpush.msra.mxu0 %v205
    %269 = vmatpush.msra.mxu0 %v201
    %270 = vmatpush.msra.mxu0 %v197
    %271 = vmatpush.msra.mxu0 %v193
    %272 = vmatpush.msra.mxu0 %v189
    %273 = vmatpush.msra.mxu0 %v185
    %274 = vmatpush.msra.mxu0 %v181
    %275 = vmatpush.msra.mxu0 %v177
    %276 = vmatpush.msra.mxu0 %v173
    %277 = vmatpush.msra.mxu0 %v169
    %278 = vmatmul.f32.gmra.mxu0 %v167
    %v279 = vpop.f32.mrf.mxu0
    %v280 = vadd.f32 %v235, %v279
    %281 = vdwg.mxu0
    %282 = vmatpush.msra.mxu0 %v230
    %283 = vmatpush.msra.mxu0 %v226
    %284 = vmatpush.msra.mxu0 %v222
    %285 = vmatpush.msra.mxu0 %v218
    %286 = vmatpush.msra.mxu0 %v214
    %287 = vmatpush.msra.mxu0 %v210
    %288 = vmatpush.msra.mxu0 %v206
    %289 = vmatpush.msra.mxu0 %v202
    %290 = vmatpush.msra.mxu0 %v198
    %291 = vmatpush.msra.mxu0 %v194
    %292 = vmatpush.msra.mxu0 %v190
    %293 = vmatpush.msra.mxu0 %v186
    %294 = vmatpush.msra.mxu0 %v182
    %295 = vmatpush.msra.mxu0 %v178
    %296 = vmatpush.msra.mxu0 %v174
    %297 = vmatpush.msra.mxu0 %v170
    %298 = vmatmul.f32.gmra.mxu0 %v167
    %v299 = vpop.f32.mrf.mxu0
    %v300 = vadd.f32 %v236, %v299
    %301 = vdwg.mxu0
    %302 = vmatpush.msra.mxu0 %v231
    %303 = vmatpush.msra.mxu0 %v227
    %304 = vmatpush.msra.mxu0 %v223
    %305 = vmatpush.msra.mxu0 %v219
    %306 = vmatpush.msra.mxu0 %v215
    %307 = vmatpush.msra.mxu0 %v211
    %308 = vmatpush.msra.mxu0 %v207
    %309 = vmatpush.msra.mxu0 %v203
    %310 = vmatpush.msra.mxu0 %v199
    %311 = vmatpush.msra.mxu0 %v195
    %312 = vmatpush.msra.mxu0 %v191
    %313 = vmatpush.msra.mxu0 %v187
    %314 = vmatpush.msra.mxu0 %v183
    %315 = vmatpush.msra.mxu0 %v179
    %316 = vmatpush.msra.mxu0 %v175
    %317 = vmatpush.msra.mxu0 %v171
    %318 = vmatmul.f32.gmra.mxu0 %v167
    %v319 = vpop.f32.mrf.mxu0
    %v320 = vadd.f32 %v237, %v319
    %321 = vdwg.mxu0
    %v322 = vld [vmem:[#allocation9] sm:$0xff]
    %v323 = vld [vmem:[#allocation9 + $0x8] sm:$0xff]
    %v324 = vld [vmem:[#allocation9 + $0x10] sm:$0xff]
    %v325 = vld [vmem:[#allocation9 + $0x18] sm:$0xff]
    %v326 = vld [vmem:[#allocation9 + $0x20] sm:$0xff]
    %v327 = vld [vmem:[#allocation9 + $0x28] sm:$0xff]
    %v328 = vld [vmem:[#allocation9 + $0x30] sm:$0xff]
    %v329 = vld [vmem:[#allocation9 + $0x38] sm:$0xff]
    %v330 = vld [vmem:[#allocation9 + $0x40] sm:$0xff]
    %v331 = vld [vmem:[#allocation9 + $0x48] sm:$0xff]
    %v332 = vld [vmem:[#allocation9 + $0x50] sm:$0xff]
    %v333 = vld [vmem:[#allocation9 + $0x58] sm:$0xff]
    %v334 = vld [vmem:[#allocation9 + $0x60] sm:$0xff]
    %v335 = vld [vmem:[#allocation9 + $0x68] sm:$0xff]
    %v336 = vld [vmem:[#allocation9 + $0x70] sm:$0xff]
    %v337 = vld [vmem:[#allocation9 + $0x78] sm:$0xff]
    %v338 = vld [vmem:[#allocation9 + $0x80] sm:$0xff]
    %v339 = vld [vmem:[#allocation9 + $0x88] sm:$0xff]
    %v340 = vld [vmem:[#allocation9 + $0x90] sm:$0xff]
    %v341 = vld [vmem:[#allocation9 + $0x98] sm:$0xff]
    %v342 = vld [vmem:[#allocation9 + $0xa0] sm:$0xff]
    %v343 = vld [vmem:[#allocation9 + $0xa8] sm:$0xff]
    %v344 = vld [vmem:[#allocation9 + $0xb0] sm:$0xff]
    %v345 = vld [vmem:[#allocation9 + $0xb8] sm:$0xff]
    %v346 = vld [vmem:[#allocation9 + $0xc0] sm:$0xff]
    %v347 = vld [vmem:[#allocation9 + $0xc8] sm:$0xff]
    %v348 = vld [vmem:[#allocation9 + $0xd0] sm:$0xff]
    %v349 = vld [vmem:[#allocation9 + $0xd8] sm:$0xff]
    %v350 = vld [vmem:[#allocation9 + $0xe0] sm:$0xff]
    %v351 = vld [vmem:[#allocation9 + $0xe8] sm:$0xff]
    %v352 = vld [vmem:[#allocation9 + $0xf0] sm:$0xff]
    %v353 = vld [vmem:[#allocation9 + $0xf8] sm:$0xff]
    %v354 = vld [vmem:[#allocation9 + $0x100] sm:$0xff]
    %v355 = vld [vmem:[#allocation9 + $0x108] sm:$0xff]
    %v356 = vld [vmem:[#allocation9 + $0x110] sm:$0xff]
    %v357 = vld [vmem:[#allocation9 + $0x118] sm:$0xff]
    %v358 = vld [vmem:[#allocation9 + $0x120] sm:$0xff]
    %v359 = vld [vmem:[#allocation9 + $0x128] sm:$0xff]
    %v360 = vld [vmem:[#allocation9 + $0x130] sm:$0xff]
    %v361 = vld [vmem:[#allocation9 + $0x138] sm:$0xff]
    %v362 = vld [vmem:[#allocation9 + $0x140] sm:$0xff]
    %v363 = vld [vmem:[#allocation9 + $0x148] sm:$0xff]
    %v364 = vld [vmem:[#allocation9 + $0x150] sm:$0xff]
    %v365 = vld [vmem:[#allocation9 + $0x158] sm:$0xff]
    %v366 = vld [vmem:[#allocation9 + $0x160] sm:$0xff]
    %v367 = vld [vmem:[#allocation9 + $0x168] sm:$0xff]
    %v368 = vld [vmem:[#allocation9 + $0x170] sm:$0xff]
    %v369 = vld [vmem:[#allocation9 + $0x178] sm:$0xff]
    %v370 = vld [vmem:[#allocation9 + $0x180] sm:$0xff]
    %v371 = vld [vmem:[#allocation9 + $0x188] sm:$0xff]
    %v372 = vld [vmem:[#allocation9 + $0x190] sm:$0xff]
    %v373 = vld [vmem:[#allocation9 + $0x198] sm:$0xff]
    %v374 = vld [vmem:[#allocation9 + $0x1a0] sm:$0xff]
    %v375 = vld [vmem:[#allocation9 + $0x1a8] sm:$0xff]
    %v376 = vld [vmem:[#allocation9 + $0x1b0] sm:$0xff]
    %v377 = vld [vmem:[#allocation9 + $0x1b8] sm:$0xff]
    %v378 = vld [vmem:[#allocation9 + $0x1c0] sm:$0xff]
    %v379 = vld [vmem:[#allocation9 + $0x1c8] sm:$0xff]
    %v380 = vld [vmem:[#allocation9 + $0x1d0] sm:$0xff]
    %v381 = vld [vmem:[#allocation9 + $0x1d8] sm:$0xff]
    %v382 = vld [vmem:[#allocation9 + $0x1e0] sm:$0xff]
    %v383 = vld [vmem:[#allocation9 + $0x1e8] sm:$0xff]
    %v384 = vld [vmem:[#allocation9 + $0x1f0] sm:$0xff]
    %v385 = vld [vmem:[#allocation9 + $0x1f8] sm:$0xff]
    %386 = vmatpush.msra.mxu0 %v382
    %387 = vmatpush.msra.mxu0 %v378
    %388 = vmatpush.msra.mxu0 %v374
    %389 = vmatpush.msra.mxu0 %v370
    %390 = vmatpush.msra.mxu0 %v366
    %391 = vmatpush.msra.mxu0 %v362
    %392 = vmatpush.msra.mxu0 %v358
    %393 = vmatpush.msra.mxu0 %v354
    %394 = vmatpush.msra.mxu0 %v350
    %395 = vmatpush.msra.mxu0 %v346
    %396 = vmatpush.msra.mxu0 %v342
    %397 = vmatpush.msra.mxu0 %v338
    %398 = vmatpush.msra.mxu0 %v334
    %399 = vmatpush.msra.mxu0 %v330
    %400 = vmatpush.msra.mxu0 %v326
    %401 = vmatpush.msra.mxu0 %v322
    %402 = vmatmul.f32.gmra.mxu0 0.0
    %v403 = vpop.f32.mrf.mxu0
    %v404 = vadd.f32 %v260, %v403
    %405 = vdwg.mxu0
    %406 = vmatpush.msra.mxu0 %v383
    %407 = vmatpush.msra.mxu0 %v379
    %408 = vmatpush.msra.mxu0 %v375
    %409 = vmatpush.msra.mxu0 %v371
    %410 = vmatpush.msra.mxu0 %v367
    %411 = vmatpush.msra.mxu0 %v363
    %412 = vmatpush.msra.mxu0 %v359
    %413 = vmatpush.msra.mxu0 %v355
    %414 = vmatpush.msra.mxu0 %v351
    %415 = vmatpush.msra.mxu0 %v347
    %416 = vmatpush.msra.mxu0 %v343
    %417 = vmatpush.msra.mxu0 %v339
    %418 = vmatpush.msra.mxu0 %v335
    %419 = vmatpush.msra.mxu0 %v331
    %420 = vmatpush.msra.mxu0 %v327
    %421 = vmatpush.msra.mxu0 %v323
    %422 = vmatmul.f32.gmra.mxu0 0.0
    %v423 = vpop.f32.mrf.mxu0
    %v424 = vadd.f32 %v280, %v423
    %425 = vdwg.mxu0
    %426 = vmatpush.msra.mxu0 %v384
    %427 = vmatpush.msra.mxu0 %v380
    %428 = vmatpush.msra.mxu0 %v376
    %429 = vmatpush.msra.mxu0 %v372
    %430 = vmatpush.msra.mxu0 %v368
    %431 = vmatpush.msra.mxu0 %v364
    %432 = vmatpush.msra.mxu0 %v360
    %433 = vmatpush.msra.mxu0 %v356
    %434 = vmatpush.msra.mxu0 %v352
    %435 = vmatpush.msra.mxu0 %v348
    %436 = vmatpush.msra.mxu0 %v344
    %437 = vmatpush.msra.mxu0 %v340
    %438 = vmatpush.msra.mxu0 %v336
    %439 = vmatpush.msra.mxu0 %v332
    %440 = vmatpush.msra.mxu0 %v328
    %441 = vmatpush.msra.mxu0 %v324
    %442 = vmatmul.f32.gmra.mxu0 0.0
    %v443 = vpop.f32.mrf.mxu0
    %v444 = vadd.f32 %v300, %v443
    %445 = vdwg.mxu0
    %446 = vmatpush.msra.mxu0 %v385
    %447 = vmatpush.msra.mxu0 %v381
    %448 = vmatpush.msra.mxu0 %v377
    %449 = vmatpush.msra.mxu0 %v373
    %450 = vmatpush.msra.mxu0 %v369
    %451 = vmatpush.msra.mxu0 %v365
    %452 = vmatpush.msra.mxu0 %v361
    %453 = vmatpush.msra.mxu0 %v357
    %454 = vmatpush.msra.mxu0 %v353
    %455 = vmatpush.msra.mxu0 %v349
    %456 = vmatpush.msra.mxu0 %v345
    %457 = vmatpush.msra.mxu0 %v341
    %458 = vmatpush.msra.mxu0 %v337
    %459 = vmatpush.msra.mxu0 %v333
    %460 = vmatpush.msra.mxu0 %v329
    %461 = vmatpush.msra.mxu0 %v325
    %462 = vmatmul.f32.gmra.mxu0 0.0
    %v463 = vpop.f32.mrf.mxu0
    %v464 = vadd.f32 %v320, %v463
    %465 = vdwg.mxu0
    %v466 = vxor.u32 %v404, 2147483648
    %v467 = vmul.f32 %v466, 1.442695
    %v468 = vpow.pop %v467
    %v469 = vadd.f32 %v468, 1.0
    %v470 = vrcp.pop %v469
    %v471 = vmul.f32 %v469, %v470
    %v472 = vsub.f32 1.0, %v471
    %v473 = vmul.f32 %v470, %v472
    %v474 = vadd.f32 %v470, %v473
    %vm475 = vweird.f32 %v469
    %vm476 = vweird.f32 %v470
    %vm477 = vmor %vm475, %vm476
    %v478 = vsel %vm477, %v470, %v474
    %v479 = vand.u32 2147483647, %v469
    %vm480 = vcmp.eq.f32.partialorder %v479, 8.507059e+37
    %v481 = vand.u32 %v469, 2147483648
    %v482 = vor.u32 1.1754944e-38, %v481
    %v483 = vsel %vm480, %v482, %v478
    %v484 = vmul.f32 1.0, %v483
    %v485 = vxor.u32 %v424, 2147483648
    %v486 = vmul.f32 %v485, 1.442695
    %v487 = vpow.pop %v486
    %v488 = vadd.f32 %v487, 1.0
    %v489 = vrcp.pop %v488
    %v490 = vmul.f32 %v488, %v489
    %v491 = vsub.f32 1.0, %v490
    %v492 = vmul.f32 %v489, %v491
    %v493 = vadd.f32 %v489, %v492
    %vm494 = vweird.f32 %v488
    %vm495 = vweird.f32 %v489
    %vm496 = vmor %vm494, %vm495
    %v497 = vsel %vm496, %v489, %v493
    %v498 = vand.u32 2147483647, %v488
    %vm499 = vcmp.eq.f32.partialorder %v498, 8.507059e+37
    %v500 = vand.u32 %v488, 2147483648
    %v501 = vor.u32 1.1754944e-38, %v500
    %v502 = vsel %vm499, %v501, %v497
    %v503 = vmul.f32 1.0, %v502
    %v504 = vtanh.pop %v444
    %v505 = vxor.u32 %v464, 2147483648
    %v506 = vmul.f32 %v505, 1.442695
    %v507 = vpow.pop %v506
    %v508 = vadd.f32 %v507, 1.0
    %v509 = vrcp.pop %v508
    %v510 = vmul.f32 %v508, %v509
    %v511 = vsub.f32 1.0, %v510
    %v512 = vmul.f32 %v509, %v511
    %v513 = vadd.f32 %v509, %v512
    %vm514 = vweird.f32 %v508
    %vm515 = vweird.f32 %v509
    %vm516 = vmor %vm514, %vm515
    %v517 = vsel %vm516, %v509, %v513
    %v518 = vand.u32 2147483647, %v508
    %vm519 = vcmp.eq.f32.partialorder %v518, 8.507059e+37
    %v520 = vand.u32 %v508, 2147483648
    %v521 = vor.u32 1.1754944e-38, %v520
    %v522 = vsel %vm519, %v521, %v517
    %v523 = vmul.f32 1.0, %v522
    %v524 = vmul.f32 %v503, 0.0
    %v525 = vmul.f32 %v484, %v504
    %v526 = vadd.f32 %v524, %v525
    %v527 = vtanh.pop %v526
    %v528 = vmul.f32 %v523, %v527
    %v533 = vrot.slane %v260, 1
    %v534 = vrot.slane %v280, 1
    %v535 = vrot.slane %v300, 1
    %v536 = vrot.slane %v320, 1
    %541 = vmatpush.msra.mxu0 %v382
    %542 = vmatpush.msra.mxu0 %v378
    %543 = vmatpush.msra.mxu0 %v374
    %544 = vmatpush.msra.mxu0 %v370
    %545 = vmatpush.msra.mxu0 %v366
    %546 = vmatpush.msra.mxu0 %v362
    %547 = vmatpush.msra.mxu0 %v358
    %548 = vmatpush.msra.mxu0 %v354
    %549 = vmatpush.msra.mxu0 %v350
    %550 = vmatpush.msra.mxu0 %v346
    %551 = vmatpush.msra.mxu0 %v342
    %552 = vmatpush.msra.mxu0 %v338
    %553 = vmatpush.msra.mxu0 %v334
    %554 = vmatpush.msra.mxu0 %v330
    %555 = vmatpush.msra.mxu0 %v326
    %556 = vmatpush.msra.mxu0 %v322
    %557 = vmatmul.f32.gmra.mxu0 %v528
    %v558 = vpop.f32.mrf.mxu0
    %v559 = vadd.f32 %v533, %v558
    %560 = vdwg.mxu0
    %561 = vmatpush.msra.mxu0 %v383
    %562 = vmatpush.msra.mxu0 %v379
    %563 = vmatpush.msra.mxu0 %v375
    %564 = vmatpush.msra.mxu0 %v371
    %565 = vmatpush.msra.mxu0 %v367
    %566 = vmatpush.msra.mxu0 %v363
    %567 = vmatpush.msra.mxu0 %v359
    %568 = vmatpush.msra.mxu0 %v355
    %569 = vmatpush.msra.mxu0 %v351
    %570 = vmatpush.msra.mxu0 %v347
    %571 = vmatpush.msra.mxu0 %v343
    %572 = vmatpush.msra.mxu0 %v339
    %573 = vmatpush.msra.mxu0 %v335
    %574 = vmatpush.msra.mxu0 %v331
    %575 = vmatpush.msra.mxu0 %v327
    %576 = vmatpush.msra.mxu0 %v323
    %577 = vmatmul.f32.gmra.mxu0 %v528
    %v578 = vpop.f32.mrf.mxu0
    %v579 = vadd.f32 %v534, %v578
    %580 = vdwg.mxu0
    %581 = vmatpush.msra.mxu0 %v384
    %582 = vmatpush.msra.mxu0 %v380
    %583 = vmatpush.msra.mxu0 %v376
    %584 = vmatpush.msra.mxu0 %v372
    %585 = vmatpush.msra.mxu0 %v368
    %586 = vmatpush.msra.mxu0 %v364
    %587 = vmatpush.msra.mxu0 %v360
    %588 = vmatpush.msra.mxu0 %v356
    %589 = vmatpush.msra.mxu0 %v352
    %590 = vmatpush.msra.mxu0 %v348
    %591 = vmatpush.msra.mxu0 %v344
    %592 = vmatpush.msra.mxu0 %v340
    %593 = vmatpush.msra.mxu0 %v336
    %594 = vmatpush.msra.mxu0 %v332
    %595 = vmatpush.msra.mxu0 %v328
    %596 = vmatpush.msra.mxu0 %v324
    %597 = vmatmul.f32.gmra.mxu0 %v528
    %v598 = vpop.f32.mrf.mxu0
    %v599 = vadd.f32 %v535, %v598
    %600 = vdwg.mxu0
    %601 = vmatpush.msra.mxu0 %v385
    %602 = vmatpush.msra.mxu0 %v381
    %603 = vmatpush.msra.mxu0 %v377
    %604 = vmatpush.msra.mxu0 %v373
    %605 = vmatpush.msra.mxu0 %v369
    %606 = vmatpush.msra.mxu0 %v365
    %607 = vmatpush.msra.mxu0 %v361
    %608 = vmatpush.msra.mxu0 %v357
    %609 = vmatpush.msra.mxu0 %v353
    %610 = vmatpush.msra.mxu0 %v349
    %611 = vmatpush.msra.mxu0 %v345
    %612 = vmatpush.msra.mxu0 %v341
    %613 = vmatpush.msra.mxu0 %v337
    %614 = vmatpush.msra.mxu0 %v333
    %615 = vmatpush.msra.mxu0 %v329
    %616 = vmatpush.msra.mxu0 %v325
    %617 = vmatmul.f32.gmra.mxu0 %v528
    %v618 = vpop.f32.mrf.mxu0
    %v619 = vadd.f32 %v536, %v618
    %620 = vdwg.mxu0
    %v621 = vxor.u32 %v559, 2147483648
    %v622 = vmul.f32 %v621, 1.442695
    %v623 = vpow.pop %v622
    %v624 = vadd.f32 %v623, 1.0
    %v625 = vrcp.pop %v624
    %v626 = vmul.f32 %v624, %v625
    %v627 = vsub.f32 1.0, %v626
    %v628 = vmul.f32 %v625, %v627
    %v629 = vadd.f32 %v625, %v628
    %vm630 = vweird.f32 %v624
    %vm631 = vweird.f32 %v625
    %vm632 = vmor %vm630, %vm631
    %v633 = vsel %vm632, %v625, %v629
    %v634 = vand.u32 2147483647, %v624
    %vm635 = vcmp.eq.f32.partialorder %v634, 8.507059e+37
    %v636 = vand.u32 %v624, 2147483648
    %v637 = vor.u32 1.1754944e-38, %v636
    %v638 = vsel %vm635, %v637, %v633
    %v639 = vmul.f32 1.0, %v638
    %v640 = vxor.u32 %v579, 2147483648
    %v641 = vmul.f32 %v640, 1.442695
    %v642 = vpow.pop %v641
    %v643 = vadd.f32 %v642, 1.0
    %v644 = vrcp.pop %v643
    %v645 = vmul.f32 %v643, %v644
    %v646 = vsub.f32 1.0, %v645
    %v647 = vmul.f32 %v644, %v646
    %v648 = vadd.f32 %v644, %v647
    %vm649 = vweird.f32 %v643
    %vm650 = vweird.f32 %v644
    %vm651 = vmor %vm649, %vm650
    %v652 = vsel %vm651, %v644, %v648
    %v653 = vand.u32 2147483647, %v643
    %vm654 = vcmp.eq.f32.partialorder %v653, 8.507059e+37
    %v655 = vand.u32 %v643, 2147483648
    %v656 = vor.u32 1.1754944e-38, %v655
    %v657 = vsel %vm654, %v656, %v652
    %v658 = vmul.f32 1.0, %v657
    %v659 = vtanh.pop %v599
    %v660 = vxor.u32 %v619, 2147483648
    %v661 = vmul.f32 %v660, 1.442695
    %v662 = vpow.pop %v661
    %v663 = vadd.f32 %v662, 1.0
    %v664 = vrcp.pop %v663
    %v665 = vmul.f32 %v663, %v664
    %v666 = vsub.f32 1.0, %v665
    %v667 = vmul.f32 %v664, %v666
    %v668 = vadd.f32 %v664, %v667
    %vm669 = vweird.f32 %v663
    %vm670 = vweird.f32 %v664
    %vm671 = vmor %vm669, %vm670
    %v672 = vsel %vm671, %v664, %v668
    %v673 = vand.u32 2147483647, %v663
    %vm674 = vcmp.eq.f32.partialorder %v673, 8.507059e+37
    %v675 = vand.u32 %v663, 2147483648
    %v676 = vor.u32 1.1754944e-38, %v675
    %v677 = vsel %vm674, %v676, %v672
    %v678 = vmul.f32 1.0, %v677
    %v679 = vmul.f32 %v658, %v526
    %v680 = vmul.f32 %v639, %v659
    %v681 = vadd.f32 %v679, %v680
    %v682 = vtanh.pop %v681
    %v683 = vmul.f32 %v678, %v682
    %v684 = vrot.slane %v260, 2
    %v685 = vrot.slane %v280, 2
    %v686 = vrot.slane %v300, 2
    %v687 = vrot.slane %v320, 2
    %692 = vmatpush.msra.mxu0 %v382
    %693 = vmatpush.msra.mxu0 %v378
    %694 = vmatpush.msra.mxu0 %v374
    %695 = vmatpush.msra.mxu0 %v370
    %696 = vmatpush.msra.mxu0 %v366
    %697 = vmatpush.msra.mxu0 %v362
    %698 = vmatpush.msra.mxu0 %v358
    %699 = vmatpush.msra.mxu0 %v354
    %700 = vmatpush.msra.mxu0 %v350
    %701 = vmatpush.msra.mxu0 %v346
    %702 = vmatpush.msra.mxu0 %v342
    %703 = vmatpush.msra.mxu0 %v338
    %704 = vmatpush.msra.mxu0 %v334
    %705 = vmatpush.msra.mxu0 %v330
    %706 = vmatpush.msra.mxu0 %v326
    %707 = vmatpush.msra.mxu0 %v322
    %708 = vmatmul.f32.gmra.mxu0 %v683
    %v709 = vpop.f32.mrf.mxu0
    %v710 = vadd.f32 %v684, %v709
    %711 = vdwg.mxu0
    %712 = vmatpush.msra.mxu0 %v383
    %713 = vmatpush.msra.mxu0 %v379
    %714 = vmatpush.msra.mxu0 %v375
    %715 = vmatpush.msra.mxu0 %v371
    %716 = vmatpush.msra.mxu0 %v367
    %717 = vmatpush.msra.mxu0 %v363
    %718 = vmatpush.msra.mxu0 %v359
    %719 = vmatpush.msra.mxu0 %v355
    %720 = vmatpush.msra.mxu0 %v351
    %721 = vmatpush.msra.mxu0 %v347
    %722 = vmatpush.msra.mxu0 %v343
    %723 = vmatpush.msra.mxu0 %v339
    %724 = vmatpush.msra.mxu0 %v335
    %725 = vmatpush.msra.mxu0 %v331
    %726 = vmatpush.msra.mxu0 %v327
    %727 = vmatpush.msra.mxu0 %v323
    %728 = vmatmul.f32.gmra.mxu0 %v683
    %v729 = vpop.f32.mrf.mxu0
    %v730 = vadd.f32 %v685, %v729
    %731 = vdwg.mxu0
    %732 = vmatpush.msra.mxu0 %v384
    %733 = vmatpush.msra.mxu0 %v380
    %734 = vmatpush.msra.mxu0 %v376
    %735 = vmatpush.msra.mxu0 %v372
    %736 = vmatpush.msra.mxu0 %v368
    %737 = vmatpush.msra.mxu0 %v364
    %738 = vmatpush.msra.mxu0 %v360
    %739 = vmatpush.msra.mxu0 %v356
    %740 = vmatpush.msra.mxu0 %v352
    %741 = vmatpush.msra.mxu0 %v348
    %742 = vmatpush.msra.mxu0 %v344
    %743 = vmatpush.msra.mxu0 %v340
    %744 = vmatpush.msra.mxu0 %v336
    %745 = vmatpush.msra.mxu0 %v332
    %746 = vmatpush.msra.mxu0 %v328
    %747 = vmatpush.msra.mxu0 %v324
    %748 = vmatmul.f32.gmra.mxu0 %v683
    %v749 = vpop.f32.mrf.mxu0
    %v750 = vadd.f32 %v686, %v749
    %751 = vdwg.mxu0
    %752 = vmatpush.msra.mxu0 %v385
    %753 = vmatpush.msra.mxu0 %v381
    %754 = vmatpush.msra.mxu0 %v377
    %755 = vmatpush.msra.mxu0 %v373
    %756 = vmatpush.msra.mxu0 %v369
    %757 = vmatpush.msra.mxu0 %v365
    %758 = vmatpush.msra.mxu0 %v361
    %759 = vmatpush.msra.mxu0 %v357
    %760 = vmatpush.msra.mxu0 %v353
    %761 = vmatpush.msra.mxu0 %v349
    %762 = vmatpush.msra.mxu0 %v345
    %763 = vmatpush.msra.mxu0 %v341
    %764 = vmatpush.msra.mxu0 %v337
    %765 = vmatpush.msra.mxu0 %v333
    %766 = vmatpush.msra.mxu0 %v329
    %767 = vmatpush.msra.mxu0 %v325
    %768 = vmatmul.f32.gmra.mxu0 %v683
    %v769 = vpop.f32.mrf.mxu0
    %v770 = vadd.f32 %v687, %v769
    %771 = vdwg.mxu0
    %v772 = vxor.u32 %v710, 2147483648
    %v773 = vmul.f32 %v772, 1.442695
    %v774 = vpow.pop %v773
    %v775 = vadd.f32 %v774, 1.0
    %v776 = vrcp.pop %v775
    %v777 = vmul.f32 %v775, %v776
    %v778 = vsub.f32 1.0, %v777
    %v779 = vmul.f32 %v776, %v778
    %v780 = vadd.f32 %v776, %v779
    %vm781 = vweird.f32 %v775
    %vm782 = vweird.f32 %v776
    %vm783 = vmor %vm781, %vm782
    %v784 = vsel %vm783, %v776, %v780
    %v785 = vand.u32 2147483647, %v775
    %vm786 = vcmp.eq.f32.partialorder %v785, 8.507059e+37
    %v787 = vand.u32 %v775, 2147483648
    %v788 = vor.u32 1.1754944e-38, %v787
    %v789 = vsel %vm786, %v788, %v784
    %v790 = vmul.f32 1.0, %v789
    %v791 = vxor.u32 %v730, 2147483648
    %v792 = vmul.f32 %v791, 1.442695
    %v793 = vpow.pop %v792
    %v794 = vadd.f32 %v793, 1.0
    %v795 = vrcp.pop %v794
    %v796 = vmul.f32 %v794, %v795
    %v797 = vsub.f32 1.0, %v796
    %v798 = vmul.f32 %v795, %v797
    %v799 = vadd.f32 %v795, %v798
    %vm800 = vweird.f32 %v794
    %vm801 = vweird.f32 %v795
    %vm802 = vmor %vm800, %vm801
    %v803 = vsel %vm802, %v795, %v799
    %v804 = vand.u32 2147483647, %v794
    %vm805 = vcmp.eq.f32.partialorder %v804, 8.507059e+37
    %v806 = vand.u32 %v794, 2147483648
    %v807 = vor.u32 1.1754944e-38, %v806
    %v808 = vsel %vm805, %v807, %v803
    %v809 = vmul.f32 1.0, %v808
    %v810 = vtanh.pop %v750
    %v811 = vxor.u32 %v770, 2147483648
    %v812 = vmul.f32 %v811, 1.442695
    %v813 = vpow.pop %v812
    %v814 = vadd.f32 %v813, 1.0
    %v815 = vrcp.pop %v814
    %v816 = vmul.f32 %v814, %v815
    %v817 = vsub.f32 1.0, %v816
    %v818 = vmul.f32 %v815, %v817
    %v819 = vadd.f32 %v815, %v818
    %vm820 = vweird.f32 %v814
    %vm821 = vweird.f32 %v815
    %vm822 = vmor %vm820, %vm821
    %v823 = vsel %vm822, %v815, %v819
    %v824 = vand.u32 2147483647, %v814
    %vm825 = vcmp.eq.f32.partialorder %v824, 8.507059e+37
    %v826 = vand.u32 %v814, 2147483648
    %v827 = vor.u32 1.1754944e-38, %v826
    %v828 = vsel %vm825, %v827, %v823
    %v829 = vmul.f32 1.0, %v828
    %v830 = vmul.f32 %v809, %v681
    %v831 = vmul.f32 %v790, %v810
    %v832 = vadd.f32 %v830, %v831
    %v833 = vtanh.pop %v832
    %v834 = vmul.f32 %v829, %v833
    %v835 = vrot.slane %v260, 3
    %v836 = vrot.slane %v280, 3
    %v837 = vrot.slane %v300, 3
    %v838 = vrot.slane %v320, 3
    %843 = vmatpush.msra.mxu0 %v382
    %844 = vmatpush.msra.mxu0 %v378
    %845 = vmatpush.msra.mxu0 %v374
    %846 = vmatpush.msra.mxu0 %v370
    %847 = vmatpush.msra.mxu0 %v366
    %848 = vmatpush.msra.mxu0 %v362
    %849 = vmatpush.msra.mxu0 %v358
    %850 = vmatpush.msra.mxu0 %v354
    %851 = vmatpush.msra.mxu0 %v350
    %852 = vmatpush.msra.mxu0 %v346
    %853 = vmatpush.msra.mxu0 %v342
    %854 = vmatpush.msra.mxu0 %v338
    %855 = vmatpush.msra.mxu0 %v334
    %856 = vmatpush.msra.mxu0 %v330
    %857 = vmatpush.msra.mxu0 %v326
    %858 = vmatpush.msra.mxu0 %v322
    %859 = vmatmul.f32.gmra.mxu0 %v834
    %v860 = vpop.f32.mrf.mxu0
    %v861 = vadd.f32 %v835, %v860
    %862 = vdwg.mxu0
    %863 = vmatpush.msra.mxu0 %v383
    %864 = vmatpush.msra.mxu0 %v379
    %865 = vmatpush.msra.mxu0 %v375
    %866 = vmatpush.msra.mxu0 %v371
    %867 = vmatpush.msra.mxu0 %v367
    %868 = vmatpush.msra.mxu0 %v363
    %869 = vmatpush.msra.mxu0 %v359
    %870 = vmatpush.msra.mxu0 %v355
    %871 = vmatpush.msra.mxu0 %v351
    %872 = vmatpush.msra.mxu0 %v347
    %873 = vmatpush.msra.mxu0 %v343
    %874 = vmatpush.msra.mxu0 %v339
    %875 = vmatpush.msra.mxu0 %v335
    %876 = vmatpush.msra.mxu0 %v331
    %877 = vmatpush.msra.mxu0 %v327
    %878 = vmatpush.msra.mxu0 %v323
    %879 = vmatmul.f32.gmra.mxu0 %v834
    %v880 = vpop.f32.mrf.mxu0
    %v881 = vadd.f32 %v836, %v880
    %882 = vdwg.mxu0
    %883 = vmatpush.msra.mxu0 %v384
    %884 = vmatpush.msra.mxu0 %v380
    %885 = vmatpush.msra.mxu0 %v376
    %886 = vmatpush.msra.mxu0 %v372
    %887 = vmatpush.msra.mxu0 %v368
    %888 = vmatpush.msra.mxu0 %v364
    %889 = vmatpush.msra.mxu0 %v360
    %890 = vmatpush.msra.mxu0 %v356
    %891 = vmatpush.msra.mxu0 %v352
    %892 = vmatpush.msra.mxu0 %v348
    %893 = vmatpush.msra.mxu0 %v344
    %894 = vmatpush.msra.mxu0 %v340
    %895 = vmatpush.msra.mxu0 %v336
    %896 = vmatpush.msra.mxu0 %v332
    %897 = vmatpush.msra.mxu0 %v328
    %898 = vmatpush.msra.mxu0 %v324
    %899 = vmatmul.f32.gmra.mxu0 %v834
    %v900 = vpop.f32.mrf.mxu0
    %v901 = vadd.f32 %v837, %v900
    %902 = vdwg.mxu0
    %903 = vmatpush.msra.mxu0 %v385
    %904 = vmatpush.msra.mxu0 %v381
    %905 = vmatpush.msra.mxu0 %v377
    %906 = vmatpush.msra.mxu0 %v373
    %907 = vmatpush.msra.mxu0 %v369
    %908 = vmatpush.msra.mxu0 %v365
    %909 = vmatpush.msra.mxu0 %v361
    %910 = vmatpush.msra.mxu0 %v357
    %911 = vmatpush.msra.mxu0 %v353
    %912 = vmatpush.msra.mxu0 %v349
    %913 = vmatpush.msra.mxu0 %v345
    %914 = vmatpush.msra.mxu0 %v341
    %915 = vmatpush.msra.mxu0 %v337
    %916 = vmatpush.msra.mxu0 %v333
    %917 = vmatpush.msra.mxu0 %v329
    %918 = vmatpush.msra.mxu0 %v325
    %919 = vmatmul.f32.gmra.mxu0 %v834
    %v920 = vpop.f32.mrf.mxu0
    %v921 = vadd.f32 %v838, %v920
    %922 = vdwg.mxu0
    %v923 = vxor.u32 %v861, 2147483648
    %v924 = vmul.f32 %v923, 1.442695
    %v925 = vpow.pop %v924
    %v926 = vadd.f32 %v925, 1.0
    %v927 = vrcp.pop %v926
    %v928 = vmul.f32 %v926, %v927
    %v929 = vsub.f32 1.0, %v928
    %v930 = vmul.f32 %v927, %v929
    %v931 = vadd.f32 %v927, %v930
    %vm932 = vweird.f32 %v926
    %vm933 = vweird.f32 %v927
    %vm934 = vmor %vm932, %vm933
    %v935 = vsel %vm934, %v927, %v931
    %v936 = vand.u32 2147483647, %v926
    %vm937 = vcmp.eq.f32.partialorder %v936, 8.507059e+37
    %v938 = vand.u32 %v926, 2147483648
    %v939 = vor.u32 1.1754944e-38, %v938
    %v940 = vsel %vm937, %v939, %v935
    %v941 = vmul.f32 1.0, %v940
    %v942 = vxor.u32 %v881, 2147483648
    %v943 = vmul.f32 %v942, 1.442695
    %v944 = vpow.pop %v943
    %v945 = vadd.f32 %v944, 1.0
    %v946 = vrcp.pop %v945
    %v947 = vmul.f32 %v945, %v946
    %v948 = vsub.f32 1.0, %v947
    %v949 = vmul.f32 %v946, %v948
    %v950 = vadd.f32 %v946, %v949
    %vm951 = vweird.f32 %v945
    %vm952 = vweird.f32 %v946
    %vm953 = vmor %vm951, %vm952
    %v954 = vsel %vm953, %v946, %v950
    %v955 = vand.u32 2147483647, %v945
    %vm956 = vcmp.eq.f32.partialorder %v955, 8.507059e+37
    %v957 = vand.u32 %v945, 2147483648
    %v958 = vor.u32 1.1754944e-38, %v957
    %v959 = vsel %vm956, %v958, %v954
    %v960 = vmul.f32 1.0, %v959
    %v961 = vtanh.pop %v901
    %v962 = vxor.u32 %v921, 2147483648
    %v963 = vmul.f32 %v962, 1.442695
    %v964 = vpow.pop %v963
    %v965 = vadd.f32 %v964, 1.0
    %v966 = vrcp.pop %v965
    %v967 = vmul.f32 %v965, %v966
    %v968 = vsub.f32 1.0, %v967
    %v969 = vmul.f32 %v966, %v968
    %v970 = vadd.f32 %v966, %v969
    %vm971 = vweird.f32 %v965
    %vm972 = vweird.f32 %v966
    %vm973 = vmor %vm971, %vm972
    %v974 = vsel %vm973, %v966, %v970
    %v975 = vand.u32 2147483647, %v965
    %vm976 = vcmp.eq.f32.partialorder %v975, 8.507059e+37
    %v977 = vand.u32 %v965, 2147483648
    %v978 = vor.u32 1.1754944e-38, %v977
    %v979 = vsel %vm976, %v978, %v974
    %v980 = vmul.f32 1.0, %v979
    %v981 = vmul.f32 %v960, %v832
    %v982 = vmul.f32 %v941, %v961
    %v983 = vadd.f32 %v981, %v982
    %v984 = vtanh.pop %v983
    %v985 = vmul.f32 %v980, %v984
    %v986 = vrot.slane %v260, 4
    %v987 = vrot.slane %v280, 4
    %v988 = vrot.slane %v300, 4
    %v989 = vrot.slane %v320, 4
    %994 = vmatpush.msra.mxu0 %v382
    %995 = vmatpush.msra.mxu0 %v378
    %996 = vmatpush.msra.mxu0 %v374
    %997 = vmatpush.msra.mxu0 %v370
    %998 = vmatpush.msra.mxu0 %v366
    %999 = vmatpush.msra.mxu0 %v362
    %1000 = vmatpush.msra.mxu0 %v358
    %1001 = vmatpush.msra.mxu0 %v354
    %1002 = vmatpush.msra.mxu0 %v350
    %1003 = vmatpush.msra.mxu0 %v346
    %1004 = vmatpush.msra.mxu0 %v342
    %1005 = vmatpush.msra.mxu0 %v338
    %1006 = vmatpush.msra.mxu0 %v334
    %1007 = vmatpush.msra.mxu0 %v330
    %1008 = vmatpush.msra.mxu0 %v326
    %1009 = vmatpush.msra.mxu0 %v322
    %1010 = vmatmul.f32.gmra.mxu0 %v985
    %v1011 = vpop.f32.mrf.mxu0
    %v1012 = vadd.f32 %v986, %v1011
    %1013 = vdwg.mxu0
    %1014 = vmatpush.msra.mxu0 %v383
    %1015 = vmatpush.msra.mxu0 %v379
    %1016 = vmatpush.msra.mxu0 %v375
    %1017 = vmatpush.msra.mxu0 %v371
    %1018 = vmatpush.msra.mxu0 %v367
    %1019 = vmatpush.msra.mxu0 %v363
    %1020 = vmatpush.msra.mxu0 %v359
    %1021 = vmatpush.msra.mxu0 %v355
    %1022 = vmatpush.msra.mxu0 %v351
    %1023 = vmatpush.msra.mxu0 %v347
    %1024 = vmatpush.msra.mxu0 %v343
    %1025 = vmatpush.msra.mxu0 %v339
    %1026 = vmatpush.msra.mxu0 %v335
    %1027 = vmatpush.msra.mxu0 %v331
    %1028 = vmatpush.msra.mxu0 %v327
    %1029 = vmatpush.msra.mxu0 %v323
    %1030 = vmatmul.f32.gmra.mxu0 %v985
    %v1031 = vpop.f32.mrf.mxu0
    %v1032 = vadd.f32 %v987, %v1031
    %1033 = vdwg.mxu0
    %1034 = vmatpush.msra.mxu0 %v384
    %1035 = vmatpush.msra.mxu0 %v380
    %1036 = vmatpush.msra.mxu0 %v376
    %1037 = vmatpush.msra.mxu0 %v372
    %1038 = vmatpush.msra.mxu0 %v368
    %1039 = vmatpush.msra.mxu0 %v364
    %1040 = vmatpush.msra.mxu0 %v360
    %1041 = vmatpush.msra.mxu0 %v356
    %1042 = vmatpush.msra.mxu0 %v352
    %1043 = vmatpush.msra.mxu0 %v348
    %1044 = vmatpush.msra.mxu0 %v344
    %1045 = vmatpush.msra.mxu0 %v340
    %1046 = vmatpush.msra.mxu0 %v336
    %1047 = vmatpush.msra.mxu0 %v332
    %1048 = vmatpush.msra.mxu0 %v328
    %1049 = vmatpush.msra.mxu0 %v324
    %1050 = vmatmul.f32.gmra.mxu0 %v985
    %v1051 = vpop.f32.mrf.mxu0
    %v1052 = vadd.f32 %v988, %v1051
    %1053 = vdwg.mxu0
    %1054 = vmatpush.msra.mxu0 %v385
    %1055 = vmatpush.msra.mxu0 %v381
    %1056 = vmatpush.msra.mxu0 %v377
    %1057 = vmatpush.msra.mxu0 %v373
    %1058 = vmatpush.msra.mxu0 %v369
    %1059 = vmatpush.msra.mxu0 %v365
    %1060 = vmatpush.msra.mxu0 %v361
    %1061 = vmatpush.msra.mxu0 %v357
    %1062 = vmatpush.msra.mxu0 %v353
    %1063 = vmatpush.msra.mxu0 %v349
    %1064 = vmatpush.msra.mxu0 %v345
    %1065 = vmatpush.msra.mxu0 %v341
    %1066 = vmatpush.msra.mxu0 %v337
    %1067 = vmatpush.msra.mxu0 %v333
    %1068 = vmatpush.msra.mxu0 %v329
    %1069 = vmatpush.msra.mxu0 %v325
    %1070 = vmatmul.f32.gmra.mxu0 %v985
    %v1071 = vpop.f32.mrf.mxu0
    %v1072 = vadd.f32 %v989, %v1071
    %1073 = vdwg.mxu0
    %v1074 = vxor.u32 %v1012, 2147483648
    %v1075 = vmul.f32 %v1074, 1.442695
    %v1076 = vpow.pop %v1075
    %v1077 = vadd.f32 %v1076, 1.0
    %v1078 = vrcp.pop %v1077
    %v1079 = vmul.f32 %v1077, %v1078
    %v1080 = vsub.f32 1.0, %v1079
    %v1081 = vmul.f32 %v1078, %v1080
    %v1082 = vadd.f32 %v1078, %v1081
    %vm1083 = vweird.f32 %v1077
    %vm1084 = vweird.f32 %v1078
    %vm1085 = vmor %vm1083, %vm1084
    %v1086 = vsel %vm1085, %v1078, %v1082
    %v1087 = vand.u32 2147483647, %v1077
    %vm1088 = vcmp.eq.f32.partialorder %v1087, 8.507059e+37
    %v1089 = vand.u32 %v1077, 2147483648
    %v1090 = vor.u32 1.1754944e-38, %v1089
    %v1091 = vsel %vm1088, %v1090, %v1086
    %v1092 = vmul.f32 1.0, %v1091
    %v1093 = vxor.u32 %v1032, 2147483648
    %v1094 = vmul.f32 %v1093, 1.442695
    %v1095 = vpow.pop %v1094
    %v1096 = vadd.f32 %v1095, 1.0
    %v1097 = vrcp.pop %v1096
    %v1098 = vmul.f32 %v1096, %v1097
    %v1099 = vsub.f32 1.0, %v1098
    %v1100 = vmul.f32 %v1097, %v1099
    %v1101 = vadd.f32 %v1097, %v1100
    %vm1102 = vweird.f32 %v1096
    %vm1103 = vweird.f32 %v1097
    %vm1104 = vmor %vm1102, %vm1103
    %v1105 = vsel %vm1104, %v1097, %v1101
    %v1106 = vand.u32 2147483647, %v1096
    %vm1107 = vcmp.eq.f32.partialorder %v1106, 8.507059e+37
    %v1108 = vand.u32 %v1096, 2147483648
    %v1109 = vor.u32 1.1754944e-38, %v1108
    %v1110 = vsel %vm1107, %v1109, %v1105
    %v1111 = vmul.f32 1.0, %v1110
    %v1112 = vtanh.pop %v1052
    %v1113 = vxor.u32 %v1072, 2147483648
    %v1114 = vmul.f32 %v1113, 1.442695
    %v1115 = vpow.pop %v1114
    %v1116 = vadd.f32 %v1115, 1.0
    %v1117 = vrcp.pop %v1116
    %v1118 = vmul.f32 %v1116, %v1117
    %v1119 = vsub.f32 1.0, %v1118
    %v1120 = vmul.f32 %v1117, %v1119
    %v1121 = vadd.f32 %v1117, %v1120
    %vm1122 = vweird.f32 %v1116
    %vm1123 = vweird.f32 %v1117
    %vm1124 = vmor %vm1122, %vm1123
    %v1125 = vsel %vm1124, %v1117, %v1121
    %v1126 = vand.u32 2147483647, %v1116
    %vm1127 = vcmp.eq.f32.partialorder %v1126, 8.507059e+37
    %v1128 = vand.u32 %v1116, 2147483648
    %v1129 = vor.u32 1.1754944e-38, %v1128
    %v1130 = vsel %vm1127, %v1129, %v1125
    %v1131 = vmul.f32 1.0, %v1130
    %v1132 = vmul.f32 %v1111, %v983
    %v1133 = vmul.f32 %v1092, %v1112
    %v1134 = vadd.f32 %v1132, %v1133
    %v1135 = vtanh.pop %v1134
    %v1136 = vmul.f32 %v1131, %v1135
    %v1137 = vrot.slane %v260, 5
    %v1138 = vrot.slane %v280, 5
    %v1139 = vrot.slane %v300, 5
    %v1140 = vrot.slane %v320, 5
    %1145 = vmatpush.msra.mxu0 %v382
    %1146 = vmatpush.msra.mxu0 %v378
    %1147 = vmatpush.msra.mxu0 %v374
    %1148 = vmatpush.msra.mxu0 %v370
    %1149 = vmatpush.msra.mxu0 %v366
    %1150 = vmatpush.msra.mxu0 %v362
    %1151 = vmatpush.msra.mxu0 %v358
    %1152 = vmatpush.msra.mxu0 %v354
    %1153 = vmatpush.msra.mxu0 %v350
    %1154 = vmatpush.msra.mxu0 %v346
    %1155 = vmatpush.msra.mxu0 %v342
    %1156 = vmatpush.msra.mxu0 %v338
    %1157 = vmatpush.msra.mxu0 %v334
    %1158 = vmatpush.msra.mxu0 %v330
    %1159 = vmatpush.msra.mxu0 %v326
    %1160 = vmatpush.msra.mxu0 %v322
    %1161 = vmatmul.f32.gmra.mxu0 %v1136
    %v1162 = vpop.f32.mrf.mxu0
    %v1163 = vadd.f32 %v1137, %v1162
    %1164 = vdwg.mxu0
    %1165 = vmatpush.msra.mxu0 %v383
    %1166 = vmatpush.msra.mxu0 %v379
    %1167 = vmatpush.msra.mxu0 %v375
    %1168 = vmatpush.msra.mxu0 %v371
    %1169 = vmatpush.msra.mxu0 %v367
    %1170 = vmatpush.msra.mxu0 %v363
    %1171 = vmatpush.msra.mxu0 %v359
    %1172 = vmatpush.msra.mxu0 %v355
    %1173 = vmatpush.msra.mxu0 %v351
    %1174 = vmatpush.msra.mxu0 %v347
    %1175 = vmatpush.msra.mxu0 %v343
    %1176 = vmatpush.msra.mxu0 %v339
    %1177 = vmatpush.msra.mxu0 %v335
    %1178 = vmatpush.msra.mxu0 %v331
    %1179 = vmatpush.msra.mxu0 %v327
    %1180 = vmatpush.msra.mxu0 %v323
    %1181 = vmatmul.f32.gmra.mxu0 %v1136
    %v1182 = vpop.f32.mrf.mxu0
    %v1183 = vadd.f32 %v1138, %v1182
    %1184 = vdwg.mxu0
    %1185 = vmatpush.msra.mxu0 %v384
    %1186 = vmatpush.msra.mxu0 %v380
    %1187 = vmatpush.msra.mxu0 %v376
    %1188 = vmatpush.msra.mxu0 %v372
    %1189 = vmatpush.msra.mxu0 %v368
    %1190 = vmatpush.msra.mxu0 %v364
    %1191 = vmatpush.msra.mxu0 %v360
    %1192 = vmatpush.msra.mxu0 %v356
    %1193 = vmatpush.msra.mxu0 %v352
    %1194 = vmatpush.msra.mxu0 %v348
    %1195 = vmatpush.msra.mxu0 %v344
    %1196 = vmatpush.msra.mxu0 %v340
    %1197 = vmatpush.msra.mxu0 %v336
    %1198 = vmatpush.msra.mxu0 %v332
    %1199 = vmatpush.msra.mxu0 %v328
    %1200 = vmatpush.msra.mxu0 %v324
    %1201 = vmatmul.f32.gmra.mxu0 %v1136
    %v1202 = vpop.f32.mrf.mxu0
    %v1203 = vadd.f32 %v1139, %v1202
    %1204 = vdwg.mxu0
    %1205 = vmatpush.msra.mxu0 %v385
    %1206 = vmatpush.msra.mxu0 %v381
    %1207 = vmatpush.msra.mxu0 %v377
    %1208 = vmatpush.msra.mxu0 %v373
    %1209 = vmatpush.msra.mxu0 %v369
    %1210 = vmatpush.msra.mxu0 %v365
    %1211 = vmatpush.msra.mxu0 %v361
    %1212 = vmatpush.msra.mxu0 %v357
    %1213 = vmatpush.msra.mxu0 %v353
    %1214 = vmatpush.msra.mxu0 %v349
    %1215 = vmatpush.msra.mxu0 %v345
    %1216 = vmatpush.msra.mxu0 %v341
    %1217 = vmatpush.msra.mxu0 %v337
    %1218 = vmatpush.msra.mxu0 %v333
    %1219 = vmatpush.msra.mxu0 %v329
    %1220 = vmatpush.msra.mxu0 %v325
    %1221 = vmatmul.f32.gmra.mxu0 %v1136
    %v1222 = vpop.f32.mrf.mxu0
    %v1223 = vadd.f32 %v1140, %v1222
    %1224 = vdwg.mxu0
    %v1225 = vxor.u32 %v1163, 2147483648
    %v1226 = vmul.f32 %v1225, 1.442695
    %v1227 = vpow.pop %v1226
    %v1228 = vadd.f32 %v1227, 1.0
    %v1229 = vrcp.pop %v1228
    %v1230 = vmul.f32 %v1228, %v1229
    %v1231 = vsub.f32 1.0, %v1230
    %v1232 = vmul.f32 %v1229, %v1231
    %v1233 = vadd.f32 %v1229, %v1232
    %vm1234 = vweird.f32 %v1228
    %vm1235 = vweird.f32 %v1229
    %vm1236 = vmor %vm1234, %vm1235
    %v1237 = vsel %vm1236, %v1229, %v1233
    %v1238 = vand.u32 2147483647, %v1228
    %vm1239 = vcmp.eq.f32.partialorder %v1238, 8.507059e+37
    %v1240 = vand.u32 %v1228, 2147483648
    %v1241 = vor.u32 1.1754944e-38, %v1240
    %v1242 = vsel %vm1239, %v1241, %v1237
    %v1243 = vmul.f32 1.0, %v1242
    %v1244 = vxor.u32 %v1183, 2147483648
    %v1245 = vmul.f32 %v1244, 1.442695
    %v1246 = vpow.pop %v1245
    %v1247 = vadd.f32 %v1246, 1.0
    %v1248 = vrcp.pop %v1247
    %v1249 = vmul.f32 %v1247, %v1248
    %v1250 = vsub.f32 1.0, %v1249
    %v1251 = vmul.f32 %v1248, %v1250
    %v1252 = vadd.f32 %v1248, %v1251
    %vm1253 = vweird.f32 %v1247
    %vm1254 = vweird.f32 %v1248
    %vm1255 = vmor %vm1253, %vm1254
    %v1256 = vsel %vm1255, %v1248, %v1252
    %v1257 = vand.u32 2147483647, %v1247
    %vm1258 = vcmp.eq.f32.partialorder %v1257, 8.507059e+37
    %v1259 = vand.u32 %v1247, 2147483648
    %v1260 = vor.u32 1.1754944e-38, %v1259
    %v1261 = vsel %vm1258, %v1260, %v1256
    %v1262 = vmul.f32 1.0, %v1261
    %v1263 = vtanh.pop %v1203
    %v1264 = vxor.u32 %v1223, 2147483648
    %v1265 = vmul.f32 %v1264, 1.442695
    %v1266 = vpow.pop %v1265
    %v1267 = vadd.f32 %v1266, 1.0
    %v1268 = vrcp.pop %v1267
    %v1269 = vmul.f32 %v1267, %v1268
    %v1270 = vsub.f32 1.0, %v1269
    %v1271 = vmul.f32 %v1268, %v1270
    %v1272 = vadd.f32 %v1268, %v1271
    %vm1273 = vweird.f32 %v1267
    %vm1274 = vweird.f32 %v1268
    %vm1275 = vmor %vm1273, %vm1274
    %v1276 = vsel %vm1275, %v1268, %v1272
    %v1277 = vand.u32 2147483647, %v1267
    %vm1278 = vcmp.eq.f32.partialorder %v1277, 8.507059e+37
    %v1279 = vand.u32 %v1267, 2147483648
    %v1280 = vor.u32 1.1754944e-38, %v1279
    %v1281 = vsel %vm1278, %v1280, %v1276
    %v1282 = vmul.f32 1.0, %v1281
    %v1283 = vmul.f32 %v1262, %v1134
    %v1284 = vmul.f32 %v1243, %v1263
    %v1285 = vadd.f32 %v1283, %v1284
    %v1286 = vtanh.pop %v1285
    %v1287 = vmul.f32 %v1282, %v1286
    %v1288 = vrot.slane %v260, 6
    %v1289 = vrot.slane %v280, 6
    %v1290 = vrot.slane %v300, 6
    %v1291 = vrot.slane %v320, 6
    %1296 = vmatpush.msra.mxu0 %v382
    %1297 = vmatpush.msra.mxu0 %v378
    %1298 = vmatpush.msra.mxu0 %v374
    %1299 = vmatpush.msra.mxu0 %v370
    %1300 = vmatpush.msra.mxu0 %v366
    %1301 = vmatpush.msra.mxu0 %v362
    %1302 = vmatpush.msra.mxu0 %v358
    %1303 = vmatpush.msra.mxu0 %v354
    %1304 = vmatpush.msra.mxu0 %v350
    %1305 = vmatpush.msra.mxu0 %v346
    %1306 = vmatpush.msra.mxu0 %v342
    %1307 = vmatpush.msra.mxu0 %v338
    %1308 = vmatpush.msra.mxu0 %v334
    %1309 = vmatpush.msra.mxu0 %v330
    %1310 = vmatpush.msra.mxu0 %v326
    %1311 = vmatpush.msra.mxu0 %v322
    %1312 = vmatmul.f32.gmra.mxu0 %v1287
    %v1313 = vpop.f32.mrf.mxu0
    %v1314 = vadd.f32 %v1288, %v1313
    %1315 = vdwg.mxu0
    %1316 = vmatpush.msra.mxu0 %v383
    %1317 = vmatpush.msra.mxu0 %v379
    %1318 = vmatpush.msra.mxu0 %v375
    %1319 = vmatpush.msra.mxu0 %v371
    %1320 = vmatpush.msra.mxu0 %v367
    %1321 = vmatpush.msra.mxu0 %v363
    %1322 = vmatpush.msra.mxu0 %v359
    %1323 = vmatpush.msra.mxu0 %v355
    %1324 = vmatpush.msra.mxu0 %v351
    %1325 = vmatpush.msra.mxu0 %v347
    %1326 = vmatpush.msra.mxu0 %v343
    %1327 = vmatpush.msra.mxu0 %v339
    %1328 = vmatpush.msra.mxu0 %v335
    %1329 = vmatpush.msra.mxu0 %v331
    %1330 = vmatpush.msra.mxu0 %v327
    %1331 = vmatpush.msra.mxu0 %v323
    %1332 = vmatmul.f32.gmra.mxu0 %v1287
    %v1333 = vpop.f32.mrf.mxu0
    %v1334 = vadd.f32 %v1289, %v1333
    %1335 = vdwg.mxu0
    %1336 = vmatpush.msra.mxu0 %v384
    %1337 = vmatpush.msra.mxu0 %v380
    %1338 = vmatpush.msra.mxu0 %v376
    %1339 = vmatpush.msra.mxu0 %v372
    %1340 = vmatpush.msra.mxu0 %v368
    %1341 = vmatpush.msra.mxu0 %v364
    %1342 = vmatpush.msra.mxu0 %v360
    %1343 = vmatpush.msra.mxu0 %v356
    %1344 = vmatpush.msra.mxu0 %v352
    %1345 = vmatpush.msra.mxu0 %v348
    %1346 = vmatpush.msra.mxu0 %v344
    %1347 = vmatpush.msra.mxu0 %v340
    %1348 = vmatpush.msra.mxu0 %v336
    %1349 = vmatpush.msra.mxu0 %v332
    %1350 = vmatpush.msra.mxu0 %v328
    %1351 = vmatpush.msra.mxu0 %v324
    %1352 = vmatmul.f32.gmra.mxu0 %v1287
    %v1353 = vpop.f32.mrf.mxu0
    %v1354 = vadd.f32 %v1290, %v1353
    %1355 = vdwg.mxu0
    %1356 = vmatpush.msra.mxu0 %v385
    %1357 = vmatpush.msra.mxu0 %v381
    %1358 = vmatpush.msra.mxu0 %v377
    %1359 = vmatpush.msra.mxu0 %v373
    %1360 = vmatpush.msra.mxu0 %v369
    %1361 = vmatpush.msra.mxu0 %v365
    %1362 = vmatpush.msra.mxu0 %v361
    %1363 = vmatpush.msra.mxu0 %v357
    %1364 = vmatpush.msra.mxu0 %v353
    %1365 = vmatpush.msra.mxu0 %v349
    %1366 = vmatpush.msra.mxu0 %v345
    %1367 = vmatpush.msra.mxu0 %v341
    %1368 = vmatpush.msra.mxu0 %v337
    %1369 = vmatpush.msra.mxu0 %v333
    %1370 = vmatpush.msra.mxu0 %v329
    %1371 = vmatpush.msra.mxu0 %v325
    %1372 = vmatmul.f32.gmra.mxu0 %v1287
    %v1373 = vpop.f32.mrf.mxu0
    %v1374 = vadd.f32 %v1291, %v1373
    %1375 = vdwg.mxu0
    %v1376 = vxor.u32 %v1314, 2147483648
    %v1377 = vmul.f32 %v1376, 1.442695
    %v1378 = vpow.pop %v1377
    %v1379 = vadd.f32 %v1378, 1.0
    %v1380 = vrcp.pop %v1379
    %v1381 = vmul.f32 %v1379, %v1380
    %v1382 = vsub.f32 1.0, %v1381
    %v1383 = vmul.f32 %v1380, %v1382
    %v1384 = vadd.f32 %v1380, %v1383
    %vm1385 = vweird.f32 %v1379
    %vm1386 = vweird.f32 %v1380
    %vm1387 = vmor %vm1385, %vm1386
    %v1388 = vsel %vm1387, %v1380, %v1384
    %v1389 = vand.u32 2147483647, %v1379
    %vm1390 = vcmp.eq.f32.partialorder %v1389, 8.507059e+37
    %v1391 = vand.u32 %v1379, 2147483648
    %v1392 = vor.u32 1.1754944e-38, %v1391
    %v1393 = vsel %vm1390, %v1392, %v1388
    %v1394 = vmul.f32 1.0, %v1393
    %v1395 = vxor.u32 %v1334, 2147483648
    %v1396 = vmul.f32 %v1395, 1.442695
    %v1397 = vpow.pop %v1396
    %v1398 = vadd.f32 %v1397, 1.0
    %v1399 = vrcp.pop %v1398
    %v1400 = vmul.f32 %v1398, %v1399
    %v1401 = vsub.f32 1.0, %v1400
    %v1402 = vmul.f32 %v1399, %v1401
    %v1403 = vadd.f32 %v1399, %v1402
    %vm1404 = vweird.f32 %v1398
    %vm1405 = vweird.f32 %v1399
    %vm1406 = vmor %vm1404, %vm1405
    %v1407 = vsel %vm1406, %v1399, %v1403
    %v1408 = vand.u32 2147483647, %v1398
    %vm1409 = vcmp.eq.f32.partialorder %v1408, 8.507059e+37
    %v1410 = vand.u32 %v1398, 2147483648
    %v1411 = vor.u32 1.1754944e-38, %v1410
    %v1412 = vsel %vm1409, %v1411, %v1407
    %v1413 = vmul.f32 1.0, %v1412
    %v1414 = vtanh.pop %v1354
    %v1415 = vxor.u32 %v1374, 2147483648
    %v1416 = vmul.f32 %v1415, 1.442695
    %v1417 = vpow.pop %v1416
    %v1418 = vadd.f32 %v1417, 1.0
    %v1419 = vrcp.pop %v1418
    %v1420 = vmul.f32 %v1418, %v1419
    %v1421 = vsub.f32 1.0, %v1420
    %v1422 = vmul.f32 %v1419, %v1421
    %v1423 = vadd.f32 %v1419, %v1422
    %vm1424 = vweird.f32 %v1418
    %vm1425 = vweird.f32 %v1419
    %vm1426 = vmor %vm1424, %vm1425
    %v1427 = vsel %vm1426, %v1419, %v1423
    %v1428 = vand.u32 2147483647, %v1418
    %vm1429 = vcmp.eq.f32.partialorder %v1428, 8.507059e+37
    %v1430 = vand.u32 %v1418, 2147483648
    %v1431 = vor.u32 1.1754944e-38, %v1430
    %v1432 = vsel %vm1429, %v1431, %v1427
    %v1433 = vmul.f32 1.0, %v1432
    %v1434 = vmul.f32 %v1413, %v1285
    %v1435 = vmul.f32 %v1394, %v1414
    %v1436 = vadd.f32 %v1434, %v1435
    %v1437 = vtanh.pop %v1436
    %v1438 = vmul.f32 %v1433, %v1437
    %v1439 = vrot.slane %v260, 7
    %v1440 = vrot.slane %v280, 7
    %v1441 = vrot.slane %v300, 7
    %v1442 = vrot.slane %v320, 7
    %1447 = vmatpush.msra.mxu0 %v382
    %1448 = vmatpush.msra.mxu0 %v378
    %1449 = vmatpush.msra.mxu0 %v374
    %1450 = vmatpush.msra.mxu0 %v370
    %1451 = vmatpush.msra.mxu0 %v366
    %1452 = vmatpush.msra.mxu0 %v362
    %1453 = vmatpush.msra.mxu0 %v358
    %1454 = vmatpush.msra.mxu0 %v354
    %1455 = vmatpush.msra.mxu0 %v350
    %1456 = vmatpush.msra.mxu0 %v346
    %1457 = vmatpush.msra.mxu0 %v342
    %1458 = vmatpush.msra.mxu0 %v338
    %1459 = vmatpush.msra.mxu0 %v334
    %1460 = vmatpush.msra.mxu0 %v330
    %1461 = vmatpush.msra.mxu0 %v326
    %1462 = vmatpush.msra.mxu0 %v322
    %1463 = vmatmul.f32.gmra.mxu0 %v1438
    %v1464 = vpop.f32.mrf.mxu0
    %v1465 = vadd.f32 %v1439, %v1464
    %1466 = vdwg.mxu0
    %1467 = vmatpush.msra.mxu0 %v383
    %1468 = vmatpush.msra.mxu0 %v379
    %1469 = vmatpush.msra.mxu0 %v375
    %1470 = vmatpush.msra.mxu0 %v371
    %1471 = vmatpush.msra.mxu0 %v367
    %1472 = vmatpush.msra.mxu0 %v363
    %1473 = vmatpush.msra.mxu0 %v359
    %1474 = vmatpush.msra.mxu0 %v355
    %1475 = vmatpush.msra.mxu0 %v351
    %1476 = vmatpush.msra.mxu0 %v347
    %1477 = vmatpush.msra.mxu0 %v343
    %1478 = vmatpush.msra.mxu0 %v339
    %1479 = vmatpush.msra.mxu0 %v335
    %1480 = vmatpush.msra.mxu0 %v331
    %1481 = vmatpush.msra.mxu0 %v327
    %1482 = vmatpush.msra.mxu0 %v323
    %1483 = vmatmul.f32.gmra.mxu0 %v1438
    %v1484 = vpop.f32.mrf.mxu0
    %v1485 = vadd.f32 %v1440, %v1484
    %1486 = vdwg.mxu0
    %1487 = vmatpush.msra.mxu0 %v384
    %1488 = vmatpush.msra.mxu0 %v380
    %1489 = vmatpush.msra.mxu0 %v376
    %1490 = vmatpush.msra.mxu0 %v372
    %1491 = vmatpush.msra.mxu0 %v368
    %1492 = vmatpush.msra.mxu0 %v364
    %1493 = vmatpush.msra.mxu0 %v360
    %1494 = vmatpush.msra.mxu0 %v356
    %1495 = vmatpush.msra.mxu0 %v352
    %1496 = vmatpush.msra.mxu0 %v348
    %1497 = vmatpush.msra.mxu0 %v344
    %1498 = vmatpush.msra.mxu0 %v340
    %1499 = vmatpush.msra.mxu0 %v336
    %1500 = vmatpush.msra.mxu0 %v332
    %1501 = vmatpush.msra.mxu0 %v328
    %1502 = vmatpush.msra.mxu0 %v324
    %1503 = vmatmul.f32.gmra.mxu0 %v1438
    %v1504 = vpop.f32.mrf.mxu0
    %v1505 = vadd.f32 %v1441, %v1504
    %1506 = vdwg.mxu0
    %1507 = vmatpush.msra.mxu0 %v385
    %1508 = vmatpush.msra.mxu0 %v381
    %1509 = vmatpush.msra.mxu0 %v377
    %1510 = vmatpush.msra.mxu0 %v373
    %1511 = vmatpush.msra.mxu0 %v369
    %1512 = vmatpush.msra.mxu0 %v365
    %1513 = vmatpush.msra.mxu0 %v361
    %1514 = vmatpush.msra.mxu0 %v357
    %1515 = vmatpush.msra.mxu0 %v353
    %1516 = vmatpush.msra.mxu0 %v349
    %1517 = vmatpush.msra.mxu0 %v345
    %1518 = vmatpush.msra.mxu0 %v341
    %1519 = vmatpush.msra.mxu0 %v337
    %1520 = vmatpush.msra.mxu0 %v333
    %1521 = vmatpush.msra.mxu0 %v329
    %1522 = vmatpush.msra.mxu0 %v325
    %1523 = vmatmul.f32.gmra.mxu0 %v1438
    %v1524 = vpop.f32.mrf.mxu0
    %v1525 = vadd.f32 %v1442, %v1524
    %1526 = vdwg.mxu0
    %v1527 = vxor.u32 %v1465, 2147483648
    %v1528 = vmul.f32 %v1527, 1.442695
    %v1529 = vpow.pop %v1528
    %v1530 = vadd.f32 %v1529, 1.0
    %v1531 = vrcp.pop %v1530
    %v1532 = vmul.f32 %v1530, %v1531
    %v1533 = vsub.f32 1.0, %v1532
    %v1534 = vmul.f32 %v1531, %v1533
    %v1535 = vadd.f32 %v1531, %v1534
    %vm1536 = vweird.f32 %v1530
    %vm1537 = vweird.f32 %v1531
    %vm1538 = vmor %vm1536, %vm1537
    %v1539 = vsel %vm1538, %v1531, %v1535
    %v1540 = vand.u32 2147483647, %v1530
    %vm1541 = vcmp.eq.f32.partialorder %v1540, 8.507059e+37
    %v1542 = vand.u32 %v1530, 2147483648
    %v1543 = vor.u32 1.1754944e-38, %v1542
    %v1544 = vsel %vm1541, %v1543, %v1539
    %v1545 = vmul.f32 1.0, %v1544
    %v1546 = vxor.u32 %v1485, 2147483648
    %v1547 = vmul.f32 %v1546, 1.442695
    %v1548 = vpow.pop %v1547
    %v1549 = vadd.f32 %v1548, 1.0
    %v1550 = vrcp.pop %v1549
    %v1551 = vmul.f32 %v1549, %v1550
    %v1552 = vsub.f32 1.0, %v1551
    %v1553 = vmul.f32 %v1550, %v1552
    %v1554 = vadd.f32 %v1550, %v1553
    %vm1555 = vweird.f32 %v1549
    %vm1556 = vweird.f32 %v1550
    %vm1557 = vmor %vm1555, %vm1556
    %v1558 = vsel %vm1557, %v1550, %v1554
    %v1559 = vand.u32 2147483647, %v1549
    %vm1560 = vcmp.eq.f32.partialorder %v1559, 8.507059e+37
    %v1561 = vand.u32 %v1549, 2147483648
    %v1562 = vor.u32 1.1754944e-38, %v1561
    %v1563 = vsel %vm1560, %v1562, %v1558
    %v1564 = vmul.f32 1.0, %v1563
    %v1565 = vtanh.pop %v1505
    %v1566 = vxor.u32 %v1525, 2147483648
    %v1567 = vmul.f32 %v1566, 1.442695
    %v1568 = vpow.pop %v1567
    %v1569 = vadd.f32 %v1568, 1.0
    %v1570 = vrcp.pop %v1569
    %v1571 = vmul.f32 %v1569, %v1570
    %v1572 = vsub.f32 1.0, %v1571
    %v1573 = vmul.f32 %v1570, %v1572
    %v1574 = vadd.f32 %v1570, %v1573
    %vm1575 = vweird.f32 %v1569
    %vm1576 = vweird.f32 %v1570
    %vm1577 = vmor %vm1575, %vm1576
    %v1578 = vsel %vm1577, %v1570, %v1574
    %v1579 = vand.u32 2147483647, %v1569
    %vm1580 = vcmp.eq.f32.partialorder %v1579, 8.507059e+37
    %v1581 = vand.u32 %v1569, 2147483648
    %v1582 = vor.u32 1.1754944e-38, %v1581
    %v1583 = vsel %vm1580, %v1582, %v1578
    %v1584 = vmul.f32 1.0, %v1583
    %v1585 = vmul.f32 %v1564, %v1436
    %v1586 = vmul.f32 %v1545, %v1565
    %v1587 = vadd.f32 %v1585, %v1586
    %v1588 = vtanh.pop %v1587
    %v1589 = vmul.f32 %v1584, %v1588
    %v1591 = vrot.slane %v683, 7
    %v1594 = vrot.slane %v834, 6
    %v1597 = vrot.slane %v985, 5
    %v1600 = vrot.slane %v1136, 4
    %v1603 = vrot.slane %v1287, 3
    %v1606 = vrot.slane %v1438, 2
    %v1609 = vrot.slane %v1589, 1
    %v1611 = vsel %vm154, %v528, %v1591
    %v1612 = vsel %vm156, %v1611, %v1594
    %v1613 = vsel %vm158, %v1612, %v1597
    %v1614 = vsel %vm160, %v1613, %v1600
    %v1615 = vsel %vm162, %v1614, %v1603
    %v1616 = vsel %vm164, %v1615, %v1606
    %v1617 = vsel %vm166, %v1616, %v1609
    %v1618 = vld [vmem:[#allocation12] sm:$0xff]
    %v1619 = vld [vmem:[#allocation12 + $0x8] sm:$0xff]
    %v1620 = vld [vmem:[#allocation12 + $0x10] sm:$0xff]
    %v1621 = vld [vmem:[#allocation12 + $0x18] sm:$0xff]
    %v1622 = vld [vmem:[#allocation12 + $0x20] sm:$0xff]
    %v1623 = vld [vmem:[#allocation12 + $0x28] sm:$0xff]
    %v1624 = vld [vmem:[#allocation12 + $0x30] sm:$0xff]
    %v1625 = vld [vmem:[#allocation12 + $0x38] sm:$0xff]
    %v1626 = vld [vmem:[#allocation12 + $0x40] sm:$0xff]
    %v1627 = vld [vmem:[#allocation12 + $0x48] sm:$0xff]
    %v1628 = vld [vmem:[#allocation12 + $0x50] sm:$0xff]
    %v1629 = vld [vmem:[#allocation12 + $0x58] sm:$0xff]
    %v1630 = vld [vmem:[#allocation12 + $0x60] sm:$0xff]
    %v1631 = vld [vmem:[#allocation12 + $0x68] sm:$0xff]
    %v1632 = vld [vmem:[#allocation12 + $0x70] sm:$0xff]
    %v1633 = vld [vmem:[#allocation12 + $0x78] sm:$0xff]
    %v1634 = vld [vmem:[%s6] sm:$0x1]
    %v1636 = vperm.slane %v1634, 0
    %1638 = vmatpush.msra.mxu0 %v1633
    %1639 = vmatpush.msra.mxu0 %v1632
    %1640 = vmatpush.msra.mxu0 %v1631
    %1641 = vmatpush.msra.mxu0 %v1630
    %1642 = vmatpush.msra.mxu0 %v1629
    %1643 = vmatpush.msra.mxu0 %v1628
    %1644 = vmatpush.msra.mxu0 %v1627
    %1645 = vmatpush.msra.mxu0 %v1626
    %1646 = vmatpush.msra.mxu0 %v1625
    %1647 = vmatpush.msra.mxu0 %v1624
    %1648 = vmatpush.msra.mxu0 %v1623
    %1649 = vmatpush.msra.mxu0 %v1622
    %1650 = vmatpush.msra.mxu0 %v1621
    %1651 = vmatpush.msra.mxu0 %v1620
    %1652 = vmatpush.msra.mxu0 %v1619
    %1653 = vmatpush.msra.mxu0 %v1618
    %1654 = vmatmul.f32.gmra.mxu0 %v1617
    %v1655 = vpop.f32.mrf.mxu0
    %v1656 = vadd.f32 %v1636, %v1655
    %1657 = vdwg.mxu0
    %1658 = vst [vmem:[#allocation13] sm:$0xff] %v1656
    // Predicated region
    $region46: #{tpu_custom_call.1} parent=1 // pred_check
      _
    $region47: #{tpu_custom_call.1} parent=1 // pred_check_branch
      %1660 = sbr.rel (0) target = $region49
    $region48: #{tpu_custom_call.1} parent=1 // pred_region
      %1662 = vsyncadd [#allocation6], 0
      %s1664 = sshll.u32 [#allocation13], 4
      %s1665 = int_to_ptr.vmem [resolvable:$true] %s1664
      %s1666 = sshll.u32 %s7, 4
      %s1667 = int_to_ptr.hbm [resolvable:$true] %s1666
      %1669 = dma.vmem_to_hbm [thread:$0]  %s1665, 128, %s1667, [#allocation6]
    $region49: #{tpu_custom_call.1} parent=1 // pred_fallthru
      _
    // Predicated region
    $region50: #{tpu_custom_call.1} parent=1 // pred_check
      _
    $region51: #{tpu_custom_call.1} parent=1 // pred_check_branch
      %1671 = sbr.rel (0) target = $region53
    $region52: #{tpu_custom_call.1} parent=1 // pred_region
      %1673 = dma.done [#allocation6], 128
    $region53: #{tpu_custom_call.1} parent=1 // pred_fallthru
      _
    %1674 = vsyncpa [#allocation5], 1
    %1675 = vsyncpa [#allocation8], 1
    %1676 = vsyncpa [#allocation11], 1
    %1677 = vsyncpa [#allocation6], 1

</llo_original>
